<compile_context>
chip_gen: v7x
topology: tpu7x:2x2x1
jax: 0.10.0
libtpu: 0.0.40
codegen_flags: <defaults>
</compile_context>

<pallas_src>
import functools

import numpy as np
import jax
import jax.numpy as jnp
from jax.experimental import pallas as pl
from jax.experimental.pallas import tpu as pltpu

LEAKY_SLOPE = 0.01   # nn.LeakyReLU default
BN_EPS = 1e-5        # nn.BatchNorm1d default
LANE = 128


def _sinusoid_table(n_position, d_hid):
    """Matches PositionalEncoding._get_sinusoid_encoding_table (numpy)."""
    pos = np.arange(n_position, dtype=np.float64)[:, None]
    hid = np.arange(d_hid)[None, :]
    angle = pos / np.power(10000.0, 2.0 * (hid // 2) / d_hid)
    table = np.zeros((n_position, d_hid), dtype=np.float64)
    table[:, 0::2] = np.sin(angle[:, 0::2])
    table[:, 1::2] = np.cos(angle[:, 1::2])
    return jnp.asarray(table, dtype=jnp.float32)


def _sa_classifier_kernel(x_ref, w_qkv_ref, pos_ref, w_fc_ref, b_fc_ref,
                          w_out_ref, b_out_ref, o_ref, *, tb, dim_seq, ge):
    S, GE = dim_seq, ge

    # ---- fused linear_in + Q|K|V projection: one (tb*S, Din) @ (Din, 3*GE)
    # matmul (linear_in, bias, positional table and the attention scale are all
    # pre-folded into w_qkv_ref / pos_ref in the wrapper).
    qkv = jnp.dot(x_ref[...], w_qkv_ref[...],
                  preferred_element_type=jnp.float32)          # (tb*S, 3GE)

    # (tb*S, 3GE) -> (tb, S, 3GE): layout-trivial sublane split (S mult of 8 or
    # tb == full batch); then broadcast-add the (S, 3GE) pos/bias table.
    qkv = qkv.reshape(tb, S, 3 * GE) + pos_ref[...][None]

    # ---- dropout: identity at inference ----

    # Each projection occupies its own 128-lane column group -> tile-aligned
    # slices, no cross-lane relayout. Padded columns are exactly zero.
    q = qkv[:, :, :GE]
    k = qkv[:, :, GE:2 * GE]
    v = qkv[:, :, 2 * GE:]

    # ---- scaled dot-product self-attention, softmax over keys ----
    scores = jnp.einsum('bqe,bke->bqk', q, k,
                        preferred_element_type=jnp.float32)    # (tb, S, S)
    m = jnp.max(scores, axis=-1, keepdims=True)
    e = jnp.exp(scores - m)
    # Denominator is only (tb, S, 1) elements; exact reciprocal keeps the
    # strict f32 tolerance (flip approx=True if S grows large).
    attn = e * pl.reciprocal(jnp.sum(e, axis=-1, keepdims=True), approx=False)
    weighted = jnp.einsum('bqk,bke->bqe', attn, v,
                          preferred_element_type=jnp.float32)  # (tb, S, GE)

    # ---- fc over the flattened (S*E) features without any scratch roundtrip:
    # accumulate S lane-aligned (tb, GE) x (GE, H1) matmuls against the
    # row-regrouped (zero-padded) w_fc. Loop length is S (fixed, small), not tb.
    acc = jnp.dot(weighted[:, 0, :], w_fc_ref[:GE, :],
                  preferred_element_type=jnp.float32)
    for s in range(1, S):
        acc = acc + jnp.dot(weighted[:, s, :], w_fc_ref[s * GE:(s + 1) * GE, :],
                            preferred_element_type=jnp.float32)
    fc = acc + b_fc_ref[...]

    # ---- LeakyReLU ----
    act = jnp.where(fc >= 0, fc, LEAKY_SLOPE * fc)

    # ---- eval-mode BatchNorm1d folded into linear_out (wrapper);
    # output zero-padded to 128 lanes -> lane-dense full-tile store.
    out = jnp.dot(act, w_out_ref[...],
                  preferred_element_type=jnp.float32) + b_out_ref[...]
    o_ref[...] = out.astype(o_ref.dtype)


def _default_batch_block(B, S, target_rows=1024):
    """Multiple-of-8 divisor of B with ~<=target_rows rows/step; prefers >=2
    grid steps so v7x megacore can shard the batch axis."""
    candidates = [t for t in range(8, B + 1, 8) if B % t == 0]
    if not candidates:
        return B                          # tiny / odd batch: one full block
    within = [t for t in candidates if t * S <= target_rows]
    tb = max(within) if within else min(candidates)
    if tb == B and (B // 2) in candidates:
        tb = B // 2                       # ensure grid >= 2 when possible
    return tb


def self_attention_classifier(x, params, *, dim_h0, dim_seq, dim_emb,
                              batch_block=None):
    B, S, dim_in = x.shape
    assert S == dim_seq
    H1 = params['w_fc'].shape[1]
    dim_out = params['w_out'].shape[1]
    f32 = jnp.float32

    tb = _default_batch_block(B, S) if batch_block is None else batch_block
    assert B % tb == 0 and (tb % 8 == 0 or tb == B), \
        "batch_block must divide B and be a multiple of 8 (or equal B)"
    grid = (B // tb,)

    GE = ((dim_emb + LANE - 1) // LANE) * LANE     # padded per-projection width
    DOUT = ((dim_out + LANE - 1) // LANE) * LANE   # lane-dense output width

    scale = 1.0 / (float(dim_h0) ** 0.5)

    # ---- host/XLA-side constant folds (tiny; hoisted out of the hot path) ----
    # attention scale folded into the q projection; linear_in folded into QKV:
    #   qkv = x @ (W_in @ W_qkv) + ((pos_table + b_in) @ W_qkv + b_qkv)
    w_qkv = jnp.concatenate([params['wq'] * scale, params['wk'], params['wv']],
                            axis=1).astype(f32)                      # (H0, 3E)
    b_qkv = jnp.concatenate([params['bq'] * scale, params['bk'], params['bv']],
                            axis=1).astype(f32)                      # (1, 3E)
    w_comb = params['w_in'].astype(f32) @ w_qkv                      # (Din, 3E)
    pos_qkv = ((params['pos_table'] + params['b_in']).astype(f32) @ w_qkv
               + b_qkv)                                              # (S, 3E)

    def pad_col_groups(m):  # (R, 3E) -> (R, 3*GE), each group lane-tile aligned
        out = jnp.zeros((m.shape[0], 3 * GE), f32)
        for g in range(3):
            out = out.at[:, g * GE:g * GE + dim_emb].set(
                m[:, g * dim_emb:(g + 1) * dim_emb])
        return out

    w_comb_p = pad_col_groups(w_comb)                                # (Din, 3GE)
    pos_p = pad_col_groups(pos_qkv)                                  # (S, 3GE)

    # w_fc rows regrouped to match the padded (S, GE) layout of `weighted`.
    w_fc_p = jnp.zeros((S * GE, H1), f32)
    for s in range(S):
        w_fc_p = w_fc_p.at[s * GE:s * GE + dim_emb, :].set(
            params['w_fc'][s * dim_emb:(s + 1) * dim_emb, :].astype(f32))

    # eval-mode BatchNorm folded into linear_out; zero-pad to 128 output lanes.
    a = params['bn_gamma'] * jax.lax.rsqrt(params['bn_var'] + BN_EPS)  # (1, H1)
    w_out_f = (a.reshape(H1, 1) * params['w_out']).astype(f32)         # (H1, dout)
    b_out_f = ((params['bn_beta'] - params['bn_mean'] * a) @ params['w_out']
               + params['b_out']).astype(f32)                          # (1, dout)
    w_out_p = jnp.zeros((H1, DOUT), f32).at[:, :dim_out].set(w_out_f)
    b_out_p = jnp.zeros((1, DOUT), f32).at[:, :dim_out].set(b_out_f)

    x_flat = x.reshape(B * S, dim_in).astype(f32)    # batch folded into M dim

    kernel = functools.partial(_sa_classifier_kernel, tb=tb, dim_seq=S, ge=GE)

    rows = tb * S
    batch_rows = lambda i: (i, 0)   # x / out tiles follow the batch grid
    const = lambda i: (0, 0)        # weights DMA'd once, VMEM-resident

    grid_spec = pltpu.PrefetchScalarGridSpec(
        num_scalar_prefetch=0,
        grid=grid,
        in_specs=[
            pl.BlockSpec((rows, dim_in), batch_rows),   # x (flattened)
            pl.BlockSpec(w_comb_p.shape, const),        # fused W_in@W_qkv (padded)
            pl.BlockSpec(pos_p.shape, const),           # (pos+b_in)@W_qkv + b_qkv
            pl.BlockSpec(w_fc_p.shape, const),          # row-regrouped w_fc
            pl.BlockSpec(params['b_fc'].shape, const),  # b_fc
            pl.BlockSpec(w_out_p.shape, const),         # BN-folded w_out (padded)
            pl.BlockSpec(b_out_p.shape, const),         # BN-folded b_out (padded)
        ],
        out_specs=pl.BlockSpec((tb, DOUT), batch_rows),
    )

    out_padded = pl.pallas_call(
        kernel,
        out_shape=jax.ShapeDtypeStruct((B, DOUT), f32),
        grid_spec=grid_spec,
        compiler_params=pltpu.CompilerParams(
            dimension_semantics=("parallel",),
            vmem_limit_bytes=32 * 1024 * 1024),
    )(x_flat, w_comb_p, pos_p, w_fc_p, params['b_fc'].astype(f32),
      w_out_p, b_out_p)

    return out_padded[:, :dim_out]


def _reference(x, p, *, dim_h0):
    """Pure-JAX reference (mirrors the PyTorch module, eval mode)."""
    h = jnp.einsum('bsd,dh->bsh', x, p['w_in']) + p['b_in'][None]
    h = h + p['pos_table'][None]
    q = jnp.einsum('bsh,he->bse', h, p['wq']) + p['bq'][None]
    k = jnp.einsum('bsh,he->bse', h, p['wk']) + p['bk'][None]
    v = jnp.einsum('bsh,he->bse', h, p['wv']) + p['bv'][None]
    scores = jnp.einsum('bqe,bke->bqk', q, k) / (dim_h0 ** 0.5)
    attn = jax.nn.softmax(scores, axis=-1)
    weighted = jnp.einsum('bqk,bke->bqe', attn, v)
    flat = weighted.reshape(x.shape[0], -1)
    fc = flat @ p['w_fc'] + p['b_fc']
    act = jnp.where(fc >= 0, fc, LEAKY_SLOPE * fc)
    bn = (act - p['bn_mean']) * jax.lax.rsqrt(p['bn_var'] + BN_EPS) \
         * p['bn_gamma'] + p['bn_beta']
    return bn @ p['w_out'] + p['b_out']


if __name__ == "__main__":
    # Small shapes consistent with the module's forward.
    B, dim_in, dim_seq = 2, 8, 8
    dim_h0, dim_emb, dim_h1, dim_out = 32, 32, 32, 2

    key = jax.random.PRNGKey(0)
    ks = jax.random.split(key, 16)

    def winit(k, shape, scale=0.05):
        return (scale * jax.random.normal(k, shape)).astype(jnp.float32)

    params = {
        'w_in':  winit(ks[0], (dim_in, dim_h0)),
        'b_in':  winit(ks[1], (1, dim_h0)),
        'pos_table': _sinusoid_table(dim_seq, dim_h0),
        'wq': winit(ks[2], (dim_h0, dim_emb)),
        'bq': winit(ks[3], (1, dim_emb)),
        'wk': winit(ks[4], (dim_h0, dim_emb)),
        'bk': winit(ks[5], (1, dim_emb)),
        'wv': winit(ks[6], (dim_h0, dim_emb)),
        'bv': winit(ks[7], (1, dim_emb)),
        'w_fc': winit(ks[8], (dim_seq * dim_emb, dim_h1)),
        'b_fc': winit(ks[9], (1, dim_h1)),
        'bn_gamma': jnp.ones((1, dim_h1), jnp.float32),
        'bn_beta':  jnp.zeros((1, dim_h1), jnp.float32),
        'bn_mean':  jnp.zeros((1, dim_h1), jnp.float32),   # fresh running stats
        'bn_var':   jnp.ones((1, dim_h1), jnp.float32),
        'w_out': winit(ks[10], (dim_h1, dim_out)),
        'b_out': winit(ks[11], (1, dim_out)),
    }

    # --- check 1: module-sized shapes (B=2 -> single full-batch block) ---
    x = jax.random.normal(ks[12], (B, dim_seq, dim_in), dtype=jnp.float32)
    out = self_attention_classifier(x, params, dim_h0=dim_h0,
                                    dim_seq=dim_seq, dim_emb=dim_emb)
    out = jax.block_until_ready(out)
    ref = _reference(x, params, dim_h0=dim_h0)
    assert out.shape == (B, dim_out)
    np.testing.assert_allclose(np.asarray(out), np.asarray(ref),
                               rtol=3e-4, atol=3e-5)

    # --- check 2: larger batch exercising the pipelined multi-step grid
    # (tb multiple of 8, grid >= 2 so v7x megacore gets both cores busy) ---
    B2 = 32
    x2 = jax.random.normal(ks[13], (B2, dim_seq, dim_in), dtype=jnp.float32)
    out2 = self_attention_classifier(x2, params, dim_h0=dim_h0,
                                     dim_seq=dim_seq, dim_emb=dim_emb)
    out2 = jax.block_until_ready(out2)
    ref2 = _reference(x2, params, dim_h0=dim_h0)
    assert out2.shape == (B2, dim_out)
    np.testing.assert_allclose(np.asarray(out2), np.asarray(ref2),
                               rtol=3e-4, atol=3e-5)

    # TODO(synk): training-mode dropout / batch-statistics BatchNorm not
    # implemented (inference semantics only).
    print("KERNEL_OK")
</pallas_src>

<mosaic_0001>
module attributes {stable_mosaic.version = 11 : i64} {
  func.func @_sa_classifier_kernel(%arg0: i32, %arg1: memref<16x8xf32, #tpu.memory_space<vmem>>, %arg2: memref<8x384xf32, #tpu.memory_space<vmem>>, %arg3: memref<8x384xf32, #tpu.memory_space<vmem>>, %arg4: memref<1024x32xf32, #tpu.memory_space<vmem>>, %arg5: memref<1x32xf32, #tpu.memory_space<vmem>>, %arg6: memref<32x128xf32, #tpu.memory_space<vmem>>, %arg7: memref<1x128xf32, #tpu.memory_space<vmem>>, %arg8: memref<2x128xf32, #tpu.memory_space<vmem>>) attributes {dimension_semantics = [#tpu.dimension_semantics<parallel>], iteration_bounds = array<i64: 1>, scalar_prefetch = 0 : i64, scratch_operands = 0 : i64, tpu.core_type = #tpu.core_type<tc>, window_params = [{transform_indices = @transform_0, window_bounds = array<i64: 16, 8>}, {pipeline_mode = #tpu.pipeline_mode<synchronous>, transform_indices = @transform_1, window_bounds = array<i64: 8, 384>}, {pipeline_mode = #tpu.pipeline_mode<synchronous>, transform_indices = @transform_2, window_bounds = array<i64: 8, 384>}, {pipeline_mode = #tpu.pipeline_mode<synchronous>, transform_indices = @transform_3, window_bounds = array<i64: 1024, 32>}, {pipeline_mode = #tpu.pipeline_mode<synchronous>, transform_indices = @transform_4, window_bounds = array<i64: 1, 32>}, {pipeline_mode = #tpu.pipeline_mode<synchronous>, transform_indices = @transform_5, window_bounds = array<i64: 32, 128>}, {pipeline_mode = #tpu.pipeline_mode<synchronous>, transform_indices = @transform_6, window_bounds = array<i64: 1, 128>}, {transform_indices = @transform_7, window_bounds = array<i64: 2, 128>}]} {
    %c0 = arith.constant 0 : index
    %c0_0 = arith.constant 0 : index
    %0 = vector.load %arg1[%c0, %c0_0] : memref<16x8xf32, #tpu.memory_space<vmem>>, vector<16x8xf32>
    %c0_1 = arith.constant 0 : index
    %c0_2 = arith.constant 0 : index
    %1 = vector.load %arg2[%c0_1, %c0_2] : memref<8x384xf32, #tpu.memory_space<vmem>>, vector<8x384xf32>
    %cst = arith.constant dense<0.000000e+00> : vector<16x384xf32>
    %2 = tpu.matmul %0, %1, %cst {dimension_numbers = #tpu.dot_dimension_numbers<[1], [0], [0], [1], [0, 0, 1, 1], [], []>} : vector<16x8xf32>, vector<8x384xf32>, vector<16x384xf32> -> vector<16x384xf32>
    %3 = vector.shape_cast %2 : vector<16x384xf32> to vector<2x8x384xf32>
    %c0_3 = arith.constant 0 : index
    %c0_4 = arith.constant 0 : index
    %4 = vector.load %arg3[%c0_3, %c0_4] : memref<8x384xf32, #tpu.memory_space<vmem>>, vector<8x384xf32>
    %5 = vector.shape_cast %4 : vector<8x384xf32> to vector<1x8x384xf32>
    %6 = vector.broadcast %5 : vector<1x8x384xf32> to vector<2x8x384xf32>
    %7 = arith.addf %3, %6 : vector<2x8x384xf32>
    %8 = vector.extract_strided_slice %7 {offsets = [0, 0, 0], sizes = [2, 8, 128], strides = [1, 1, 1]} : vector<2x8x384xf32> to vector<2x8x128xf32>
    %9 = vector.extract_strided_slice %7 {offsets = [0, 0, 128], sizes = [2, 8, 128], strides = [1, 1, 1]} : vector<2x8x384xf32> to vector<2x8x128xf32>
    %10 = vector.extract_strided_slice %7 {offsets = [0, 0, 256], sizes = [2, 8, 128], strides = [1, 1, 1]} : vector<2x8x384xf32> to vector<2x8x128xf32>
    "tpu.trace_start"() <{level = 10 : i32, message = "bqe,bke->bqk"}> : () -> ()
    %cst_5 = arith.constant dense<0.000000e+00> : vector<2x8x8xf32>
    %11 = tpu.matmul %8, %9, %cst_5 {dimension_numbers = #tpu.dot_dimension_numbers<[2], [2], [1], [1], [0, 0, 0, 1, 1, 1], [0], [0]>} : vector<2x8x128xf32>, vector<2x8x128xf32>, vector<2x8x8xf32> -> vector<2x8x8xf32>
    "tpu.trace_stop"() : () -> ()
    %cst_6 = arith.constant dense<0xFF800000> : vector<2x8xf32>
    %12 = vector.multi_reduction <maximumf>, %11, %cst_6 [2] : vector<2x8x8xf32> to vector<2x8xf32>
    %13 = vector.shape_cast %12 : vector<2x8xf32> to vector<2x8x1xf32>
    %14 = vector.broadcast %13 : vector<2x8x1xf32> to vector<2x8x8xf32>
    %15 = arith.subf %11, %14 : vector<2x8x8xf32>
    %16 = math.exp %15 : vector<2x8x8xf32>
    %cst_7 = arith.constant dense<0.000000e+00> : vector<2x8xf32>
    %17 = vector.multi_reduction <add>, %16, %cst_7 [2] : vector<2x8x8xf32> to vector<2x8xf32>
    %18 = vector.shape_cast %17 : vector<2x8xf32> to vector<2x8x1xf32>
    %19 = tpu.reciprocal %18 : vector<2x8x1xf32> -> vector<2x8x1xf32>
    %20 = vector.broadcast %19 : vector<2x8x1xf32> to vector<2x8x8xf32>
    %21 = arith.mulf %16, %20 : vector<2x8x8xf32>
    "tpu.trace_start"() <{level = 10 : i32, message = "bqk,bke->bqe"}> : () -> ()
    %cst_8 = arith.constant dense<0.000000e+00> : vector<2x8x128xf32>
    %22 = tpu.matmul %21, %10, %cst_8 {dimension_numbers = #tpu.dot_dimension_numbers<[2], [1], [1], [2], [0, 0, 0, 1, 1, 2], [0], [0]>} : vector<2x8x8xf32>, vector<2x8x128xf32>, vector<2x8x128xf32> -> vector<2x8x128xf32>
    "tpu.trace_stop"() : () -> ()
    %23 = vector.extract_strided_slice %22 {offsets = [0, 0, 0], sizes = [2, 1, 128], strides = [1, 1, 1]} : vector<2x8x128xf32> to vector<2x1x128xf32>
    %24 = vector.shape_cast %23 : vector<2x1x128xf32> to vector<2x128xf32>
    %c0_9 = arith.constant 0 : index
    %c0_10 = arith.constant 0 : index
    %25 = vector.load %arg4[%c0_9, %c0_10] : memref<1024x32xf32, #tpu.memory_space<vmem>>, vector<128x32xf32>
    %cst_11 = arith.constant dense<0.000000e+00> : vector<2x32xf32>
    %26 = tpu.matmul %24, %25, %cst_11 {dimension_numbers = #tpu.dot_dimension_numbers<[1], [0], [0], [1], [0, 0, 1, 1], [], []>} : vector<2x128xf32>, vector<128x32xf32>, vector<2x32xf32> -> vector<2x32xf32>
    %27 = vector.extract_strided_slice %22 {offsets = [0, 1, 0], sizes = [2, 1, 128], strides = [1, 1, 1]} : vector<2x8x128xf32> to vector<2x1x128xf32>
    %28 = vector.shape_cast %27 : vector<2x1x128xf32> to vector<2x128xf32>
    %c128 = arith.constant 128 : index
    %c0_12 = arith.constant 0 : index
    %29 = vector.load %arg4[%c128, %c0_12] : memref<1024x32xf32, #tpu.memory_space<vmem>>, vector<128x32xf32>
    %cst_13 = arith.constant dense<0.000000e+00> : vector<2x32xf32>
    %30 = tpu.matmul %28, %29, %cst_13 {dimension_numbers = #tpu.dot_dimension_numbers<[1], [0], [0], [1], [0, 0, 1, 1], [], []>} : vector<2x128xf32>, vector<128x32xf32>, vector<2x32xf32> -> vector<2x32xf32>
    %31 = arith.addf %26, %30 : vector<2x32xf32>
    %32 = vector.extract_strided_slice %22 {offsets = [0, 2, 0], sizes = [2, 1, 128], strides = [1, 1, 1]} : vector<2x8x128xf32> to vector<2x1x128xf32>
    %33 = vector.shape_cast %32 : vector<2x1x128xf32> to vector<2x128xf32>
    %c256 = arith.constant 256 : index
    %c0_14 = arith.constant 0 : index
    %34 = vector.load %arg4[%c256, %c0_14] : memref<1024x32xf32, #tpu.memory_space<vmem>>, vector<128x32xf32>
    %cst_15 = arith.constant dense<0.000000e+00> : vector<2x32xf32>
    %35 = tpu.matmul %33, %34, %cst_15 {dimension_numbers = #tpu.dot_dimension_numbers<[1], [0], [0], [1], [0, 0, 1, 1], [], []>} : vector<2x128xf32>, vector<128x32xf32>, vector<2x32xf32> -> vector<2x32xf32>
    %36 = arith.addf %31, %35 : vector<2x32xf32>
    %37 = vector.extract_strided_slice %22 {offsets = [0, 3, 0], sizes = [2, 1, 128], strides = [1, 1, 1]} : vector<2x8x128xf32> to vector<2x1x128xf32>
    %38 = vector.shape_cast %37 : vector<2x1x128xf32> to vector<2x128xf32>
    %c384 = arith.constant 384 : index
    %c0_16 = arith.constant 0 : index
    %39 = vector.load %arg4[%c384, %c0_16] : memref<1024x32xf32, #tpu.memory_space<vmem>>, vector<128x32xf32>
    %cst_17 = arith.constant dense<0.000000e+00> : vector<2x32xf32>
    %40 = tpu.matmul %38, %39, %cst_17 {dimension_numbers = #tpu.dot_dimension_numbers<[1], [0], [0], [1], [0, 0, 1, 1], [], []>} : vector<2x128xf32>, vector<128x32xf32>, vector<2x32xf32> -> vector<2x32xf32>
    %41 = arith.addf %36, %40 : vector<2x32xf32>
    %42 = vector.extract_strided_slice %22 {offsets = [0, 4, 0], sizes = [2, 1, 128], strides = [1, 1, 1]} : vector<2x8x128xf32> to vector<2x1x128xf32>
    %43 = vector.shape_cast %42 : vector<2x1x128xf32> to vector<2x128xf32>
    %c512 = arith.constant 512 : index
    %c0_18 = arith.constant 0 : index
    %44 = vector.load %arg4[%c512, %c0_18] : memref<1024x32xf32, #tpu.memory_space<vmem>>, vector<128x32xf32>
    %cst_19 = arith.constant dense<0.000000e+00> : vector<2x32xf32>
    %45 = tpu.matmul %43, %44, %cst_19 {dimension_numbers = #tpu.dot_dimension_numbers<[1], [0], [0], [1], [0, 0, 1, 1], [], []>} : vector<2x128xf32>, vector<128x32xf32>, vector<2x32xf32> -> vector<2x32xf32>
    %46 = arith.addf %41, %45 : vector<2x32xf32>
    %47 = vector.extract_strided_slice %22 {offsets = [0, 5, 0], sizes = [2, 1, 128], strides = [1, 1, 1]} : vector<2x8x128xf32> to vector<2x1x128xf32>
    %48 = vector.shape_cast %47 : vector<2x1x128xf32> to vector<2x128xf32>
    %c640 = arith.constant 640 : index
    %c0_20 = arith.constant 0 : index
    %49 = vector.load %arg4[%c640, %c0_20] : memref<1024x32xf32, #tpu.memory_space<vmem>>, vector<128x32xf32>
    %cst_21 = arith.constant dense<0.000000e+00> : vector<2x32xf32>
    %50 = tpu.matmul %48, %49, %cst_21 {dimension_numbers = #tpu.dot_dimension_numbers<[1], [0], [0], [1], [0, 0, 1, 1], [], []>} : vector<2x128xf32>, vector<128x32xf32>, vector<2x32xf32> -> vector<2x32xf32>
    %51 = arith.addf %46, %50 : vector<2x32xf32>
    %52 = vector.extract_strided_slice %22 {offsets = [0, 6, 0], sizes = [2, 1, 128], strides = [1, 1, 1]} : vector<2x8x128xf32> to vector<2x1x128xf32>
    %53 = vector.shape_cast %52 : vector<2x1x128xf32> to vector<2x128xf32>
    %c768 = arith.constant 768 : index
    %c0_22 = arith.constant 0 : index
    %54 = vector.load %arg4[%c768, %c0_22] : memref<1024x32xf32, #tpu.memory_space<vmem>>, vector<128x32xf32>
    %cst_23 = arith.constant dense<0.000000e+00> : vector<2x32xf32>
    %55 = tpu.matmul %53, %54, %cst_23 {dimension_numbers = #tpu.dot_dimension_numbers<[1], [0], [0], [1], [0, 0, 1, 1], [], []>} : vector<2x128xf32>, vector<128x32xf32>, vector<2x32xf32> -> vector<2x32xf32>
    %56 = arith.addf %51, %55 : vector<2x32xf32>
    %57 = vector.extract_strided_slice %22 {offsets = [0, 7, 0], sizes = [2, 1, 128], strides = [1, 1, 1]} : vector<2x8x128xf32> to vector<2x1x128xf32>
    %58 = vector.shape_cast %57 : vector<2x1x128xf32> to vector<2x128xf32>
    %c896 = arith.constant 896 : index
    %c0_24 = arith.constant 0 : index
    %59 = vector.load %arg4[%c896, %c0_24] : memref<1024x32xf32, #tpu.memory_space<vmem>>, vector<128x32xf32>
    %cst_25 = arith.constant dense<0.000000e+00> : vector<2x32xf32>
    %60 = tpu.matmul %58, %59, %cst_25 {dimension_numbers = #tpu.dot_dimension_numbers<[1], [0], [0], [1], [0, 0, 1, 1], [], []>} : vector<2x128xf32>, vector<128x32xf32>, vector<2x32xf32> -> vector<2x32xf32>
    %61 = arith.addf %56, %60 : vector<2x32xf32>
    %c0_26 = arith.constant 0 : index
    %c0_27 = arith.constant 0 : index
    %62 = vector.load %arg5[%c0_26, %c0_27] : memref<1x32xf32, #tpu.memory_space<vmem>>, vector<1x32xf32>
    %63 = vector.broadcast %62 : vector<1x32xf32> to vector<2x32xf32>
    %64 = arith.addf %61, %63 : vector<2x32xf32>
    %cst_28 = arith.constant 0.000000e+00 : f32
    %65 = vector.broadcast %cst_28 : f32 to vector<2x32xf32>
    %66 = arith.cmpf oge, %64, %65 : vector<2x32xf32>
    %cst_29 = arith.constant 0.00999999977 : f32
    %67 = vector.broadcast %cst_29 : f32 to vector<2x32xf32>
    %68 = arith.mulf %67, %64 : vector<2x32xf32>
    %69 = arith.select %66, %64, %68 : vector<2x32xi1>, vector<2x32xf32>
    %c0_30 = arith.constant 0 : index
    %c0_31 = arith.constant 0 : index
    %70 = vector.load %arg6[%c0_30, %c0_31] : memref<32x128xf32, #tpu.memory_space<vmem>>, vector<32x128xf32>
    %cst_32 = arith.constant dense<0.000000e+00> : vector<2x128xf32>
    %71 = tpu.matmul %69, %70, %cst_32 {dimension_numbers = #tpu.dot_dimension_numbers<[1], [0], [0], [1], [0, 0, 1, 1], [], []>} : vector<2x32xf32>, vector<32x128xf32>, vector<2x128xf32> -> vector<2x128xf32>
    %c0_33 = arith.constant 0 : index
    %c0_34 = arith.constant 0 : index
    %72 = vector.load %arg7[%c0_33, %c0_34] : memref<1x128xf32, #tpu.memory_space<vmem>>, vector<1x128xf32>
    %73 = vector.broadcast %72 : vector<1x128xf32> to vector<2x128xf32>
    %74 = arith.addf %71, %73 : vector<2x128xf32>
    %c0_35 = arith.constant 0 : index
    %c0_36 = arith.constant 0 : index
    %75 = vector.load %arg8[%c0_35, %c0_36] : memref<2x128xf32, #tpu.memory_space<vmem>>, vector<2x128xf32>
    tpu.vector_store %arg8[%c0_35, %c0_36], %74 {strides = array<i32>} : memref<2x128xf32, #tpu.memory_space<vmem>>, vector<2x128xf32>,
    return
  }
  func.func @transform_0(%arg0: i32) -> (i32, i32) {
    %c0_i32 = arith.constant 0 : i32
    %c0_i32_0 = arith.constant 0 : i32
    return %arg0, %c0_i32 : i32, i32
  }
  func.func @transform_1(%arg0: i32) -> (i32, i32) {
    %c0_i32 = arith.constant 0 : i32
    %c0_i32_0 = arith.constant 0 : i32
    %c0_i32_1 = arith.constant 0 : i32
    return %c0_i32, %c0_i32_0 : i32, i32
  }
  func.func @transform_2(%arg0: i32) -> (i32, i32) {
    %c0_i32 = arith.constant 0 : i32
    %c0_i32_0 = arith.constant 0 : i32
    %c0_i32_1 = arith.constant 0 : i32
    return %c0_i32, %c0_i32_0 : i32, i32
  }
  func.func @transform_3(%arg0: i32) -> (i32, i32) {
    %c0_i32 = arith.constant 0 : i32
    %c0_i32_0 = arith.constant 0 : i32
    %c0_i32_1 = arith.constant 0 : i32
    return %c0_i32, %c0_i32_0 : i32, i32
  }
  func.func @transform_4(%arg0: i32) -> (i32, i32) {
    %c0_i32 = arith.constant 0 : i32
    %c0_i32_0 = arith.constant 0 : i32
    %c0_i32_1 = arith.constant 0 : i32
    return %c0_i32, %c0_i32_0 : i32, i32
  }
  func.func @transform_5(%arg0: i32) -> (i32, i32) {
    %c0_i32 = arith.constant 0 : i32
    %c0_i32_0 = arith.constant 0 : i32
    %c0_i32_1 = arith.constant 0 : i32
    return %c0_i32, %c0_i32_0 : i32, i32
  }
  func.func @transform_6(%arg0: i32) -> (i32, i32) {
    %c0_i32 = arith.constant 0 : i32
    %c0_i32_0 = arith.constant 0 : i32
    %c0_i32_1 = arith.constant 0 : i32
    return %c0_i32, %c0_i32_0 : i32, i32
  }
  func.func @transform_7(%arg0: i32) -> (i32, i32) {
    %c0_i32 = arith.constant 0 : i32
    %c0_i32_0 = arith.constant 0 : i32
    return %arg0, %c0_i32 : i32, i32
  }
}

</mosaic_0001>

<llo_original>
// kernel: tpu_custom_call.1
$region0: #{tpu_custom_call.1}
  #allocation0 [shape = 'u32[]', space=smem, size = 0x4, offset = 0x4, fixed_abs, tag = 'smem constant byte address 0x4 - core index']
  #allocation1 [shape = 'u32[144,128]{1,0:T(1,128)}', space=vmem, size = 0x12000, scoped, tag = 'internal scratch']
  %s0 = inlined_call_operand.vmem [shape: f32[16,8], index: 0, kind: input, shape index: {}]
  %s1 = inlined_call_operand.vmem [shape: f32[8,384], index: 1, kind: input, shape index: {}]
  %s2 = inlined_call_operand.vmem [shape: f32[8,384], index: 2, kind: input, shape index: {}]
  %s3 = inlined_call_operand.vmem [shape: f32[1024,32], index: 3, kind: input, shape index: {}]
  %s4 = inlined_call_operand.vmem [shape: f32[1,32], index: 4, kind: input, shape index: {}]
  %s5 = inlined_call_operand.vmem [shape: f32[32,128], index: 5, kind: input, shape index: {}]
  %s6 = inlined_call_operand.vmem [shape: f32[1,128], index: 6, kind: input, shape index: {}]
  %s7 = inlined_call_operand.hbm [shape: f32[2,128], index: 7, kind: output, shape index: {}]
  %s8 = sld [smem:[#allocation0]]
  $region38: #{tpu_custom_call.1} parent=0
    _
  %s10 = ssub.s32 1, %s8
  %s11 = scalar_select 0, %s10, %s8
  $region1: #{tpu_custom_call.1} parent=0
    #allocation2 [shape = 'u8[1024]{0}', space=vmem, size = 0x400, scoped, tag = 'output window, operand 0, single buffered']
    #allocation3 [shape = 's32[1]{0}', space=sflag, size = 0x4, scoped, tag = 'scoped memory for tpu_custom_call.1']
    %12 = vsyncpa [#allocation3], 0
    // Predicated region
    $region2: #{tpu_custom_call.1} parent=1 // pred_check
      _
    $region3: #{tpu_custom_call.1} parent=1 // pred_check_branch
      %14 = sbr.rel (0) target = $region5
    $region4: #{tpu_custom_call.1} parent=1 // pred_region
      _
    $region5: #{tpu_custom_call.1} parent=1 // pred_fallthru
      _
    // Predicated region
    $region6: #{tpu_custom_call.1} parent=1 // pred_check
      _
    $region7: #{tpu_custom_call.1} parent=1 // pred_check_branch
      %16 = sbr.rel (0) target = $region9
    $region8: #{tpu_custom_call.1} parent=1 // pred_region
      _
    $region9: #{tpu_custom_call.1} parent=1 // pred_fallthru
      _
    // Predicated region
    $region10: #{tpu_custom_call.1} parent=1 // pred_check
      _
    $region11: #{tpu_custom_call.1} parent=1 // pred_check_branch
      %18 = sbr.rel (0) target = $region13
    $region12: #{tpu_custom_call.1} parent=1 // pred_region
      _
    $region13: #{tpu_custom_call.1} parent=1 // pred_fallthru
      _
    // Predicated region
    $region14: #{tpu_custom_call.1} parent=1 // pred_check
      _
    $region15: #{tpu_custom_call.1} parent=1 // pred_check_branch
      %20 = sbr.rel (0) target = $region17
    $region16: #{tpu_custom_call.1} parent=1 // pred_region
      _
    $region17: #{tpu_custom_call.1} parent=1 // pred_fallthru
      _
    // Predicated region
    $region18: #{tpu_custom_call.1} parent=1 // pred_check
      _
    $region19: #{tpu_custom_call.1} parent=1 // pred_check_branch
      %22 = sbr.rel (0) target = $region21
    $region20: #{tpu_custom_call.1} parent=1 // pred_region
      _
    $region21: #{tpu_custom_call.1} parent=1 // pred_fallthru
      _
    // Predicated region
    $region22: #{tpu_custom_call.1} parent=1 // pred_check
      _
    $region23: #{tpu_custom_call.1} parent=1 // pred_check_branch
      %24 = sbr.rel (0) target = $region25
    $region24: #{tpu_custom_call.1} parent=1 // pred_region
      _
    $region25: #{tpu_custom_call.1} parent=1 // pred_fallthru
      _
    // Predicated region
    $region26: #{tpu_custom_call.1} parent=1 // pred_check
      _
    $region27: #{tpu_custom_call.1} parent=1 // pred_check_branch
      %26 = sbr.rel (0) target = $region29
    $region28: #{tpu_custom_call.1} parent=1 // pred_region
      _
    $region29: #{tpu_custom_call.1} parent=1 // pred_fallthru
      _
    %v27 = vld [vmem:[%s0] sm:$0xff]
    %v28 = vld [vmem:[%s0 + $0x8] sm:$0xff]
    %v29 = vld [vmem:[%s1] sm:$0xff]
    %v30 = vld [vmem:[%s1 + $0x8] sm:$0xff]
    %v31 = vld [vmem:[%s1 + $0x10] sm:$0xff]
    %vm32 = vcmask 64512
    %v34 = vsel %vm32, %v27, 0
    %v37 = vsel %vm32, %v28, 0
    %39 = vmatprep.subr.mxu0 %v30
    %40 = vmatpush1.msra.mxu0 %v29
    %41 = vmatprep.subr.mxu0 0.0
    %42 = vmatpush1.msra.mxu0 0.0
    %43 = vmatprep.subr.mxu0 0.0
    %44 = vmatpush1.msra.mxu0 0.0
    %45 = vmatprep.subr.mxu0 0.0
    %46 = vmatpush1.msra.mxu0 0.0
    %47 = vmatprep.subr.mxu0 0.0
    %48 = vmatpush1.msra.mxu0 0.0
    %49 = vmatprep.subr.mxu0 0.0
    %50 = vmatpush1.msra.mxu0 0.0
    %51 = vmatprep.subr.mxu0 0.0
    %52 = vmatpush1.msra.mxu0 0.0
    %53 = vmatprep.subr.mxu0 0.0
    %54 = vmatpush1.msra.mxu0 0.0
    %55 = vmatprep.subr.mxu0 0.0
    %56 = vmatpush1.msra.mxu0 0.0
    %57 = vmatprep.subr.mxu0 0.0
    %58 = vmatpush1.msra.mxu0 0.0
    %59 = vmatprep.subr.mxu0 0.0
    %60 = vmatpush1.msra.mxu0 0.0
    %61 = vmatprep.subr.mxu0 0.0
    %62 = vmatpush1.msra.mxu0 0.0
    %63 = vmatprep.subr.mxu0 0.0
    %64 = vmatpush1.msra.mxu0 0.0
    %65 = vmatprep.subr.mxu0 0.0
    %66 = vmatpush1.msra.mxu0 0.0
    %67 = vmatprep.subr.mxu0 0.0
    %68 = vmatpush1.msra.mxu0 0.0
    %69 = vmatprep.subr.mxu0 0.0
    %70 = vmatpush1.msra.mxu0 0.0
    %71 = vmatprep.subr.mxu0 0.0
    %72 = vmatpush1.msra.mxu0 0.0
    %73 = vmatprep.subr.mxu0 0.0
    %74 = vmatpush1.msra.mxu0 0.0
    %75 = vmatprep.subr.mxu0 0.0
    %76 = vmatpush1.msra.mxu0 0.0
    %77 = vmatprep.subr.mxu0 0.0
    %78 = vmatpush1.msra.mxu0 0.0
    %79 = vmatprep.subr.mxu0 0.0
    %80 = vmatpush1.msra.mxu0 0.0
    %81 = vmatprep.subr.mxu0 0.0
    %82 = vmatpush1.msra.mxu0 0.0
    %83 = vmatprep.subr.mxu0 0.0
    %84 = vmatpush1.msra.mxu0 0.0
    %85 = vmatprep.subr.mxu0 0.0
    %86 = vmatpush1.msra.mxu0 0.0
    %87 = vmatprep.subr.mxu0 0.0
    %88 = vmatpush1.msra.mxu0 0.0
    %89 = vmatprep.subr.mxu0 0.0
    %90 = vmatpush1.msra.mxu0 0.0
    %91 = vmatprep.subr.mxu0 0.0
    %92 = vmatpush1.msra.mxu0 0.0
    %93 = vmatprep.subr.mxu0 0.0
    %94 = vmatpush1.msra.mxu0 0.0
    %95 = vmatprep.subr.mxu0 0.0
    %96 = vmatpush1.msra.mxu0 0.0
    %97 = vmatprep.subr.mxu0 0.0
    %98 = vmatpush1.msra.mxu0 0.0
    %99 = vmatprep.subr.mxu0 0.0
    %100 = vmatpush1.msra.mxu0 0.0
    %101 = vmatprep.subr.mxu0 0.0
    %102 = vmatpush1.msra.mxu0 0.0
    %103 = vmatprep.mubr.f32.mxu0 0.0
    %104 = vmatmul.mubr.f32.gmra.mrb[0].mxu0 %v34
    %v105 = vpop.f32.mrb[0].mxu0
    %v106 = vadd.f32 0.0, %v105
    %v107 = vpop.f32.mrb[0].mxu0
    %v108 = vadd.f32 0.0, %v107
    %109 = vmatprep.mubr.f32.mxu0 0.0
    %110 = vmatmul.mubr.f32.gmra.mrb[0].mxu0 %v37
    %v111 = vpop.f32.mrb[0].mxu0
    %v112 = vadd.f32 0.0, %v111
    %v113 = vpop.f32.mrb[0].mxu0
    %v114 = vadd.f32 0.0, %v113
    %115 = vdwg.mxu0
    %116 = vmatprep.subr.mxu0 0.0
    %117 = vmatpush1.msra.mxu0 %v31
    %118 = vmatprep.subr.mxu0 0.0
    %119 = vmatpush1.msra.mxu0 0.0
    %120 = vmatprep.subr.mxu0 0.0
    %121 = vmatpush1.msra.mxu0 0.0
    %122 = vmatprep.subr.mxu0 0.0
    %123 = vmatpush1.msra.mxu0 0.0
    %124 = vmatprep.subr.mxu0 0.0
    %125 = vmatpush1.msra.mxu0 0.0
    %126 = vmatprep.subr.mxu0 0.0
    %127 = vmatpush1.msra.mxu0 0.0
    %128 = vmatprep.subr.mxu0 0.0
    %129 = vmatpush1.msra.mxu0 0.0
    %130 = vmatprep.subr.mxu0 0.0
    %131 = vmatpush1.msra.mxu0 0.0
    %132 = vmatprep.subr.mxu0 0.0
    %133 = vmatpush1.msra.mxu0 0.0
    %134 = vmatprep.subr.mxu0 0.0
    %135 = vmatpush1.msra.mxu0 0.0
    %136 = vmatprep.subr.mxu0 0.0
    %137 = vmatpush1.msra.mxu0 0.0
    %138 = vmatprep.subr.mxu0 0.0
    %139 = vmatpush1.msra.mxu0 0.0
    %140 = vmatprep.subr.mxu0 0.0
    %141 = vmatpush1.msra.mxu0 0.0
    %142 = vmatprep.subr.mxu0 0.0
    %143 = vmatpush1.msra.mxu0 0.0
    %144 = vmatprep.subr.mxu0 0.0
    %145 = vmatpush1.msra.mxu0 0.0
    %146 = vmatprep.subr.mxu0 0.0
    %147 = vmatpush1.msra.mxu0 0.0
    %148 = vmatprep.subr.mxu0 0.0
    %149 = vmatpush1.msra.mxu0 0.0
    %150 = vmatprep.subr.mxu0 0.0
    %151 = vmatpush1.msra.mxu0 0.0
    %152 = vmatprep.subr.mxu0 0.0
    %153 = vmatpush1.msra.mxu0 0.0
    %154 = vmatprep.subr.mxu0 0.0
    %155 = vmatpush1.msra.mxu0 0.0
    %156 = vmatprep.subr.mxu0 0.0
    %157 = vmatpush1.msra.mxu0 0.0
    %158 = vmatprep.subr.mxu0 0.0
    %159 = vmatpush1.msra.mxu0 0.0
    %160 = vmatprep.subr.mxu0 0.0
    %161 = vmatpush1.msra.mxu0 0.0
    %162 = vmatprep.subr.mxu0 0.0
    %163 = vmatpush1.msra.mxu0 0.0
    %164 = vmatprep.subr.mxu0 0.0
    %165 = vmatpush1.msra.mxu0 0.0
    %166 = vmatprep.subr.mxu0 0.0
    %167 = vmatpush1.msra.mxu0 0.0
    %168 = vmatprep.subr.mxu0 0.0
    %169 = vmatpush1.msra.mxu0 0.0
    %170 = vmatprep.subr.mxu0 0.0
    %171 = vmatpush1.msra.mxu0 0.0
    %172 = vmatprep.subr.mxu0 0.0
    %173 = vmatpush1.msra.mxu0 0.0
    %174 = vmatprep.subr.mxu0 0.0
    %175 = vmatpush1.msra.mxu0 0.0
    %176 = vmatprep.subr.mxu0 0.0
    %177 = vmatpush1.msra.mxu0 0.0
    %178 = vmatprep.subr.mxu0 0.0
    %179 = vmatpush1.msra.mxu0 0.0
    %180 = vmatprep.mubr.f32.mxu0 0.0
    %181 = vmatmul.mubr.f32.gmra.mrb[0].mxu0 %v34
    %v182 = vpop.f32.mrb[0].mxu0
    %v183 = vadd.f32 0.0, %v182
    %v184 = vpop.f32.mrb[0].mxu0
    %185 = vmatprep.mubr.f32.mxu0 0.0
    %186 = vmatmul.mubr.f32.gmra.mrb[0].mxu0 %v37
    %v187 = vpop.f32.mrb[0].mxu0
    %v188 = vadd.f32 0.0, %v187
    %v189 = vpop.f32.mrb[0].mxu0
    %190 = vdwg.mxu0
    %v191 = vld [vmem:[%s2] sm:$0xff]
    %v192 = vld [vmem:[%s2 + $0x8] sm:$0xff]
    %v193 = vld [vmem:[%s2 + $0x10] sm:$0xff]
    %v194 = vadd.f32 %v106, %v191
    %v195 = vadd.f32 %v108, %v192
    %v196 = vadd.f32 %v183, %v193
    %v197 = vadd.f32 %v112, %v191
    %v198 = vadd.f32 %v114, %v192
    %v199 = vadd.f32 %v188, %v193
    %200 = vmatprep.subr.mxu0 0.0
    %201 = vmatpush1.xpose.msra.mxu0 %v195
    %202 = vmatprep.subr.mxu0 0.0
    %203 = vmatpush1.xpose.msra.mxu0 0.0
    %204 = vmatprep.subr.mxu0 0.0
    %205 = vmatpush1.xpose.msra.mxu0 0.0
    %206 = vmatprep.subr.mxu0 0.0
    %207 = vmatpush1.xpose.msra.mxu0 0.0
    %208 = vmatprep.subr.mxu0 0.0
    %209 = vmatpush1.xpose.msra.mxu0 0.0
    %210 = vmatprep.subr.mxu0 0.0
    %211 = vmatpush1.xpose.msra.mxu0 0.0
    %212 = vmatprep.subr.mxu0 0.0
    %213 = vmatpush1.xpose.msra.mxu0 0.0
    %214 = vmatprep.subr.mxu0 0.0
    %215 = vmatpush1.xpose.msra.mxu0 0.0
    %216 = vmatprep.subr.mxu0 0.0
    %217 = vmatpush1.xpose.msra.mxu0 0.0
    %218 = vmatprep.subr.mxu0 0.0
    %219 = vmatpush1.xpose.msra.mxu0 0.0
    %220 = vmatprep.subr.mxu0 0.0
    %221 = vmatpush1.xpose.msra.mxu0 0.0
    %222 = vmatprep.subr.mxu0 0.0
    %223 = vmatpush1.xpose.msra.mxu0 0.0
    %224 = vmatprep.subr.mxu0 0.0
    %225 = vmatpush1.xpose.msra.mxu0 0.0
    %226 = vmatprep.subr.mxu0 0.0
    %227 = vmatpush1.xpose.msra.mxu0 0.0
    %228 = vmatprep.subr.mxu0 0.0
    %229 = vmatpush1.xpose.msra.mxu0 0.0
    %230 = vmatprep.subr.mxu0 0.0
    %231 = vmatpush1.xpose.msra.mxu0 0.0
    %232 = vmatprep.subr.mxu0 0.0
    %233 = vmatpush1.xpose.msra.mxu0 0.0
    %234 = vmatprep.subr.mxu0 0.0
    %235 = vmatpush1.xpose.msra.mxu0 0.0
    %236 = vmatprep.subr.mxu0 0.0
    %237 = vmatpush1.xpose.msra.mxu0 0.0
    %238 = vmatprep.subr.mxu0 0.0
    %239 = vmatpush1.xpose.msra.mxu0 0.0
    %240 = vmatprep.subr.mxu0 0.0
    %241 = vmatpush1.xpose.msra.mxu0 0.0
    %242 = vmatprep.subr.mxu0 0.0
    %243 = vmatpush1.xpose.msra.mxu0 0.0
    %244 = vmatprep.subr.mxu0 0.0
    %245 = vmatpush1.xpose.msra.mxu0 0.0
    %246 = vmatprep.subr.mxu0 0.0
    %247 = vmatpush1.xpose.msra.mxu0 0.0
    %248 = vmatprep.subr.mxu0 0.0
    %249 = vmatpush1.xpose.msra.mxu0 0.0
    %250 = vmatprep.subr.mxu0 0.0
    %251 = vmatpush1.xpose.msra.mxu0 0.0
    %252 = vmatprep.subr.mxu0 0.0
    %253 = vmatpush1.xpose.msra.mxu0 0.0
    %254 = vmatprep.subr.mxu0 0.0
    %255 = vmatpush1.xpose.msra.mxu0 0.0
    %256 = vmatprep.subr.mxu0 0.0
    %257 = vmatpush1.xpose.msra.mxu0 0.0
    %258 = vmatprep.subr.mxu0 0.0
    %259 = vmatpush1.xpose.msra.mxu0 0.0
    %260 = vmatprep.subr.mxu0 0.0
    %261 = vmatpush1.xpose.msra.mxu0 0.0
    %262 = vmatprep.subr.mxu0 0.0
    %263 = vmatpush1.xpose.msra.mxu0 0.0
    %264 = vmatprep.mubr.f32.mxu0 0.0
    %265 = vmatmul.mubr.f32.gmra.mrb[0].mxu0 %v194
    %v266 = vpop.f32.mrb[0].mxu0
    %v267 = vadd.f32 0.0, %v266
    %v268 = vpop.f32.mrb[0].mxu0
    %269 = vdwg.mxu0
    %270 = vmatprep.subr.mxu0 0.0
    %271 = vmatpush1.xpose.msra.mxu0 %v198
    %272 = vmatprep.subr.mxu0 0.0
    %273 = vmatpush1.xpose.msra.mxu0 0.0
    %274 = vmatprep.subr.mxu0 0.0
    %275 = vmatpush1.xpose.msra.mxu0 0.0
    %276 = vmatprep.subr.mxu0 0.0
    %277 = vmatpush1.xpose.msra.mxu0 0.0
    %278 = vmatprep.subr.mxu0 0.0
    %279 = vmatpush1.xpose.msra.mxu0 0.0
    %280 = vmatprep.subr.mxu0 0.0
    %281 = vmatpush1.xpose.msra.mxu0 0.0
    %282 = vmatprep.subr.mxu0 0.0
    %283 = vmatpush1.xpose.msra.mxu0 0.0
    %284 = vmatprep.subr.mxu0 0.0
    %285 = vmatpush1.xpose.msra.mxu0 0.0
    %286 = vmatprep.subr.mxu0 0.0
    %287 = vmatpush1.xpose.msra.mxu0 0.0
    %288 = vmatprep.subr.mxu0 0.0
    %289 = vmatpush1.xpose.msra.mxu0 0.0
    %290 = vmatprep.subr.mxu0 0.0
    %291 = vmatpush1.xpose.msra.mxu0 0.0
    %292 = vmatprep.subr.mxu0 0.0
    %293 = vmatpush1.xpose.msra.mxu0 0.0
    %294 = vmatprep.subr.mxu0 0.0
    %295 = vmatpush1.xpose.msra.mxu0 0.0
    %296 = vmatprep.subr.mxu0 0.0
    %297 = vmatpush1.xpose.msra.mxu0 0.0
    %298 = vmatprep.subr.mxu0 0.0
    %299 = vmatpush1.xpose.msra.mxu0 0.0
    %300 = vmatprep.subr.mxu0 0.0
    %301 = vmatpush1.xpose.msra.mxu0 0.0
    %302 = vmatprep.subr.mxu0 0.0
    %303 = vmatpush1.xpose.msra.mxu0 0.0
    %304 = vmatprep.subr.mxu0 0.0
    %305 = vmatpush1.xpose.msra.mxu0 0.0
    %306 = vmatprep.subr.mxu0 0.0
    %307 = vmatpush1.xpose.msra.mxu0 0.0
    %308 = vmatprep.subr.mxu0 0.0
    %309 = vmatpush1.xpose.msra.mxu0 0.0
    %310 = vmatprep.subr.mxu0 0.0
    %311 = vmatpush1.xpose.msra.mxu0 0.0
    %312 = vmatprep.subr.mxu0 0.0
    %313 = vmatpush1.xpose.msra.mxu0 0.0
    %314 = vmatprep.subr.mxu0 0.0
    %315 = vmatpush1.xpose.msra.mxu0 0.0
    %316 = vmatprep.subr.mxu0 0.0
    %317 = vmatpush1.xpose.msra.mxu0 0.0
    %318 = vmatprep.subr.mxu0 0.0
    %319 = vmatpush1.xpose.msra.mxu0 0.0
    %320 = vmatprep.subr.mxu0 0.0
    %321 = vmatpush1.xpose.msra.mxu0 0.0
    %322 = vmatprep.subr.mxu0 0.0
    %323 = vmatpush1.xpose.msra.mxu0 0.0
    %324 = vmatprep.subr.mxu0 0.0
    %325 = vmatpush1.xpose.msra.mxu0 0.0
    %326 = vmatprep.subr.mxu0 0.0
    %327 = vmatpush1.xpose.msra.mxu0 0.0
    %328 = vmatprep.subr.mxu0 0.0
    %329 = vmatpush1.xpose.msra.mxu0 0.0
    %330 = vmatprep.subr.mxu0 0.0
    %331 = vmatpush1.xpose.msra.mxu0 0.0
    %332 = vmatprep.subr.mxu0 0.0
    %333 = vmatpush1.xpose.msra.mxu0 0.0
    %334 = vmatprep.mubr.f32.mxu0 0.0
    %335 = vmatmul.mubr.f32.gmra.mrb[0].mxu0 %v197
    %v336 = vpop.f32.mrb[0].mxu0
    %v337 = vadd.f32 0.0, %v336
    %v338 = vpop.f32.mrb[0].mxu0
    %339 = vdwg.mxu0
    %v340 = vsel %vm32, %v267, -inf
    %341 = vmax.xlane.f32.xlu0 %v340
    %v342 = vpop.xlane.xlu0 %341
    %v343 = vsel %vm32, %v337, -inf
    %344 = vmax.xlane.f32.xlu0 %v343
    %v345 = vpop.xlane.xlu0 %344
    %v346 = vsub.f32 %v267, %v342
    %v347 = vsub.f32 %v337, %v345
    %v348 = vmul.f32 %v346, 1.442695
    %v349 = vpow.pop %v348
    %v350 = vmul.f32 %v347, 1.442695
    %v351 = vpow.pop %v350
    %v352 = vsel %vm32, %v349, 0.0
    %353 = vadd.xlane.f32.xlu0 %v352
    %v354 = vpop.xlane.xlu0 %353
    %v355 = vsel %vm32, %v351, 0.0
    %356 = vadd.xlane.f32.xlu0 %v355
    %v357 = vpop.xlane.xlu0 %356
    %v358 = vrcp.pop %v354
    %v359 = vrcp.pop %v357
    %v360 = vmul.f32 %v349, %v358
    %v361 = vmul.f32 %v351, %v359
    %v363 = vsel %vm32, %v360, 0
    %365 = vmatprep.subr.mxu0 0.0
    %366 = vmatpush1.msra.mxu0 %v196
    %367 = vmatprep.subr.mxu0 0.0
    %368 = vmatpush1.msra.mxu0 0.0
    %369 = vmatprep.subr.mxu0 0.0
    %370 = vmatpush1.msra.mxu0 0.0
    %371 = vmatprep.subr.mxu0 0.0
    %372 = vmatpush1.msra.mxu0 0.0
    %373 = vmatprep.subr.mxu0 0.0
    %374 = vmatpush1.msra.mxu0 0.0
    %375 = vmatprep.subr.mxu0 0.0
    %376 = vmatpush1.msra.mxu0 0.0
    %377 = vmatprep.subr.mxu0 0.0
    %378 = vmatpush1.msra.mxu0 0.0
    %379 = vmatprep.subr.mxu0 0.0
    %380 = vmatpush1.msra.mxu0 0.0
    %381 = vmatprep.subr.mxu0 0.0
    %382 = vmatpush1.msra.mxu0 0.0
    %383 = vmatprep.subr.mxu0 0.0
    %384 = vmatpush1.msra.mxu0 0.0
    %385 = vmatprep.subr.mxu0 0.0
    %386 = vmatpush1.msra.mxu0 0.0
    %387 = vmatprep.subr.mxu0 0.0
    %388 = vmatpush1.msra.mxu0 0.0
    %389 = vmatprep.subr.mxu0 0.0
    %390 = vmatpush1.msra.mxu0 0.0
    %391 = vmatprep.subr.mxu0 0.0
    %392 = vmatpush1.msra.mxu0 0.0
    %393 = vmatprep.subr.mxu0 0.0
    %394 = vmatpush1.msra.mxu0 0.0
    %395 = vmatprep.subr.mxu0 0.0
    %396 = vmatpush1.msra.mxu0 0.0
    %397 = vmatprep.subr.mxu0 0.0
    %398 = vmatpush1.msra.mxu0 0.0
    %399 = vmatprep.subr.mxu0 0.0
    %400 = vmatpush1.msra.mxu0 0.0
    %401 = vmatprep.subr.mxu0 0.0
    %402 = vmatpush1.msra.mxu0 0.0
    %403 = vmatprep.subr.mxu0 0.0
    %404 = vmatpush1.msra.mxu0 0.0
    %405 = vmatprep.subr.mxu0 0.0
    %406 = vmatpush1.msra.mxu0 0.0
    %407 = vmatprep.subr.mxu0 0.0
    %408 = vmatpush1.msra.mxu0 0.0
    %409 = vmatprep.subr.mxu0 0.0
    %410 = vmatpush1.msra.mxu0 0.0
    %411 = vmatprep.subr.mxu0 0.0
    %412 = vmatpush1.msra.mxu0 0.0
    %413 = vmatprep.subr.mxu0 0.0
    %414 = vmatpush1.msra.mxu0 0.0
    %415 = vmatprep.subr.mxu0 0.0
    %416 = vmatpush1.msra.mxu0 0.0
    %417 = vmatprep.subr.mxu0 0.0
    %418 = vmatpush1.msra.mxu0 0.0
    %419 = vmatprep.subr.mxu0 0.0
    %420 = vmatpush1.msra.mxu0 0.0
    %421 = vmatprep.subr.mxu0 0.0
    %422 = vmatpush1.msra.mxu0 0.0
    %423 = vmatprep.subr.mxu0 0.0
    %424 = vmatpush1.msra.mxu0 0.0
    %425 = vmatprep.subr.mxu0 0.0
    %426 = vmatpush1.msra.mxu0 0.0
    %427 = vmatprep.subr.mxu0 0.0
    %428 = vmatpush1.msra.mxu0 0.0
    %429 = vmatprep.mubr.f32.mxu0 0.0
    %430 = vmatmul.mubr.f32.gmra.mrb[0].mxu0 %v363
    %v431 = vpop.f32.mrb[0].mxu0
    %v432 = vadd.f32 0.0, %v431
    %v433 = vpop.f32.mrb[0].mxu0
    %434 = vdwg.mxu0
    %v436 = vsel %vm32, %v361, 0
    %438 = vmatprep.subr.mxu0 0.0
    %439 = vmatpush1.msra.mxu0 %v199
    %440 = vmatprep.subr.mxu0 0.0
    %441 = vmatpush1.msra.mxu0 0.0
    %442 = vmatprep.subr.mxu0 0.0
    %443 = vmatpush1.msra.mxu0 0.0
    %444 = vmatprep.subr.mxu0 0.0
    %445 = vmatpush1.msra.mxu0 0.0
    %446 = vmatprep.subr.mxu0 0.0
    %447 = vmatpush1.msra.mxu0 0.0
    %448 = vmatprep.subr.mxu0 0.0
    %449 = vmatpush1.msra.mxu0 0.0
    %450 = vmatprep.subr.mxu0 0.0
    %451 = vmatpush1.msra.mxu0 0.0
    %452 = vmatprep.subr.mxu0 0.0
    %453 = vmatpush1.msra.mxu0 0.0
    %454 = vmatprep.subr.mxu0 0.0
    %455 = vmatpush1.msra.mxu0 0.0
    %456 = vmatprep.subr.mxu0 0.0
    %457 = vmatpush1.msra.mxu0 0.0
    %458 = vmatprep.subr.mxu0 0.0
    %459 = vmatpush1.msra.mxu0 0.0
    %460 = vmatprep.subr.mxu0 0.0
    %461 = vmatpush1.msra.mxu0 0.0
    %462 = vmatprep.subr.mxu0 0.0
    %463 = vmatpush1.msra.mxu0 0.0
    %464 = vmatprep.subr.mxu0 0.0
    %465 = vmatpush1.msra.mxu0 0.0
    %466 = vmatprep.subr.mxu0 0.0
    %467 = vmatpush1.msra.mxu0 0.0
    %468 = vmatprep.subr.mxu0 0.0
    %469 = vmatpush1.msra.mxu0 0.0
    %470 = vmatprep.subr.mxu0 0.0
    %471 = vmatpush1.msra.mxu0 0.0
    %472 = vmatprep.subr.mxu0 0.0
    %473 = vmatpush1.msra.mxu0 0.0
    %474 = vmatprep.subr.mxu0 0.0
    %475 = vmatpush1.msra.mxu0 0.0
    %476 = vmatprep.subr.mxu0 0.0
    %477 = vmatpush1.msra.mxu0 0.0
    %478 = vmatprep.subr.mxu0 0.0
    %479 = vmatpush1.msra.mxu0 0.0
    %480 = vmatprep.subr.mxu0 0.0
    %481 = vmatpush1.msra.mxu0 0.0
    %482 = vmatprep.subr.mxu0 0.0
    %483 = vmatpush1.msra.mxu0 0.0
    %484 = vmatprep.subr.mxu0 0.0
    %485 = vmatpush1.msra.mxu0 0.0
    %486 = vmatprep.subr.mxu0 0.0
    %487 = vmatpush1.msra.mxu0 0.0
    %488 = vmatprep.subr.mxu0 0.0
    %489 = vmatpush1.msra.mxu0 0.0
    %490 = vmatprep.subr.mxu0 0.0
    %491 = vmatpush1.msra.mxu0 0.0
    %492 = vmatprep.subr.mxu0 0.0
    %493 = vmatpush1.msra.mxu0 0.0
    %494 = vmatprep.subr.mxu0 0.0
    %495 = vmatpush1.msra.mxu0 0.0
    %496 = vmatprep.subr.mxu0 0.0
    %497 = vmatpush1.msra.mxu0 0.0
    %498 = vmatprep.subr.mxu0 0.0
    %499 = vmatpush1.msra.mxu0 0.0
    %500 = vmatprep.subr.mxu0 0.0
    %501 = vmatpush1.msra.mxu0 0.0
    %502 = vmatprep.mubr.f32.mxu0 0.0
    %503 = vmatmul.mubr.f32.gmra.mrb[0].mxu0 %v436
    %v504 = vpop.f32.mrb[0].mxu0
    %v505 = vadd.f32 0.0, %v504
    %v506 = vpop.f32.mrb[0].mxu0
    %507 = vdwg.mxu0
    %v508 = vld [vmem:[%s3] sm:$0xff]
    %v509 = vld [vmem:[%s3 + $0x8] sm:$0xff]
    %v510 = vld [vmem:[%s3 + $0x10] sm:$0xff]
    %v511 = vld [vmem:[%s3 + $0x18] sm:$0xff]
    %v512 = vld [vmem:[%s3 + $0x20] sm:$0xff]
    %v513 = vld [vmem:[%s3 + $0x28] sm:$0xff]
    %v514 = vld [vmem:[%s3 + $0x30] sm:$0xff]
    %v515 = vld [vmem:[%s3 + $0x38] sm:$0xff]
    %v516 = vld [vmem:[%s3 + $0x40] sm:$0xff]
    %v517 = vld [vmem:[%s3 + $0x48] sm:$0xff]
    %v518 = vld [vmem:[%s3 + $0x50] sm:$0xff]
    %v519 = vld [vmem:[%s3 + $0x58] sm:$0xff]
    %v520 = vld [vmem:[%s3 + $0x60] sm:$0xff]
    %v521 = vld [vmem:[%s3 + $0x68] sm:$0xff]
    %v522 = vld [vmem:[%s3 + $0x70] sm:$0xff]
    %v523 = vld [vmem:[%s3 + $0x78] sm:$0xff]
    %v524 = vld [vmem:[%s3 + $0x80] sm:$0xff]
    %v525 = vld [vmem:[%s3 + $0x88] sm:$0xff]
    %v526 = vld [vmem:[%s3 + $0x90] sm:$0xff]
    %v527 = vld [vmem:[%s3 + $0x98] sm:$0xff]
    %v528 = vld [vmem:[%s3 + $0xa0] sm:$0xff]
    %v529 = vld [vmem:[%s3 + $0xa8] sm:$0xff]
    %v530 = vld [vmem:[%s3 + $0xb0] sm:$0xff]
    %v531 = vld [vmem:[%s3 + $0xb8] sm:$0xff]
    %v532 = vld [vmem:[%s3 + $0xc0] sm:$0xff]
    %v533 = vld [vmem:[%s3 + $0xc8] sm:$0xff]
    %v534 = vld [vmem:[%s3 + $0xd0] sm:$0xff]
    %v535 = vld [vmem:[%s3 + $0xd8] sm:$0xff]
    %v536 = vld [vmem:[%s3 + $0xe0] sm:$0xff]
    %v537 = vld [vmem:[%s3 + $0xe8] sm:$0xff]
    %v538 = vld [vmem:[%s3 + $0xf0] sm:$0xff]
    %v539 = vld [vmem:[%s3 + $0xf8] sm:$0xff]
    %v542 = vrot.slane %v432, 1
    %vm543 = vcmask 1041409
    %v544 = vsel %vm543, %v505, %v542
    %546 = vmatprep.subr.mxu0 0.0
    %547 = vmatpush1.msra.mxu0 %v524
    %548 = vmatprep.subr.mxu0 0.0
    %549 = vmatpush1.msra.mxu0 %v525
    %550 = vmatprep.subr.mxu0 0.0
    %551 = vmatpush1.msra.mxu0 %v526
    %552 = vmatprep.subr.mxu0 0.0
    %553 = vmatpush1.msra.mxu0 %v527
    %554 = vmatprep.subr.mxu0 0.0
    %555 = vmatpush1.msra.mxu0 %v528
    %556 = vmatprep.subr.mxu0 0.0
    %557 = vmatpush1.msra.mxu0 %v529
    %558 = vmatprep.subr.mxu0 0.0
    %559 = vmatpush1.msra.mxu0 %v530
    %560 = vmatprep.subr.mxu0 0.0
    %561 = vmatpush1.msra.mxu0 %v531
    %562 = vmatprep.subr.mxu0 0.0
    %563 = vmatpush1.msra.mxu0 %v532
    %564 = vmatprep.subr.mxu0 0.0
    %565 = vmatpush1.msra.mxu0 %v533
    %566 = vmatprep.subr.mxu0 0.0
    %567 = vmatpush1.msra.mxu0 %v534
    %568 = vmatprep.subr.mxu0 0.0
    %569 = vmatpush1.msra.mxu0 %v535
    %570 = vmatprep.subr.mxu0 0.0
    %571 = vmatpush1.msra.mxu0 %v536
    %572 = vmatprep.subr.mxu0 0.0
    %573 = vmatpush1.msra.mxu0 %v537
    %574 = vmatprep.subr.mxu0 0.0
    %575 = vmatpush1.msra.mxu0 %v538
    %576 = vmatprep.subr.mxu0 0.0
    %577 = vmatpush1.msra.mxu0 %v539
    %578 = vmatprep.subr.mxu0 0.0
    %579 = vmatpush1.msra.mxu0 0.0
    %580 = vmatprep.subr.mxu0 0.0
    %581 = vmatpush1.msra.mxu0 0.0
    %582 = vmatprep.subr.mxu0 0.0
    %583 = vmatpush1.msra.mxu0 0.0
    %584 = vmatprep.subr.mxu0 0.0
    %585 = vmatpush1.msra.mxu0 0.0
    %586 = vmatprep.subr.mxu0 0.0
    %587 = vmatpush1.msra.mxu0 0.0
    %588 = vmatprep.subr.mxu0 0.0
    %589 = vmatpush1.msra.mxu0 0.0
    %590 = vmatprep.subr.mxu0 0.0
    %591 = vmatpush1.msra.mxu0 0.0
    %592 = vmatprep.subr.mxu0 0.0
    %593 = vmatpush1.msra.mxu0 0.0
    %594 = vmatprep.subr.mxu0 0.0
    %595 = vmatpush1.msra.mxu0 0.0
    %596 = vmatprep.subr.mxu0 0.0
    %597 = vmatpush1.msra.mxu0 0.0
    %598 = vmatprep.subr.mxu0 0.0
    %599 = vmatpush1.msra.mxu0 0.0
    %600 = vmatprep.subr.mxu0 0.0
    %601 = vmatpush1.msra.mxu0 0.0
    %602 = vmatprep.subr.mxu0 0.0
    %603 = vmatpush1.msra.mxu0 0.0
    %604 = vmatprep.subr.mxu0 0.0
    %605 = vmatpush1.msra.mxu0 0.0
    %606 = vmatprep.subr.mxu0 0.0
    %607 = vmatpush1.msra.mxu0 0.0
    %608 = vmatprep.subr.mxu0 0.0
    %609 = vmatpush1.msra.mxu0 0.0
    %610 = vmatprep.mubr.f32.mxu0 0.0
    %611 = vmatmul.mubr.f32.gmra.mrb[0].mxu0 %v544
    %v612 = vpop.f32.mrb[0].mxu0
    %v613 = vadd.f32 0.0, %v612
    %v614 = vpop.f32.mrb[0].mxu0
    %615 = vdwg.mxu0
    %v616 = vrot.slane %v505, 7
    %v617 = vsel %vm543, %v616, %v432
    %619 = vmatprep.subr.mxu0 0.0
    %620 = vmatpush1.msra.mxu0 %v508
    %621 = vmatprep.subr.mxu0 0.0
    %622 = vmatpush1.msra.mxu0 %v509
    %623 = vmatprep.subr.mxu0 0.0
    %624 = vmatpush1.msra.mxu0 %v510
    %625 = vmatprep.subr.mxu0 0.0
    %626 = vmatpush1.msra.mxu0 %v511
    %627 = vmatprep.subr.mxu0 0.0
    %628 = vmatpush1.msra.mxu0 %v512
    %629 = vmatprep.subr.mxu0 0.0
    %630 = vmatpush1.msra.mxu0 %v513
    %631 = vmatprep.subr.mxu0 0.0
    %632 = vmatpush1.msra.mxu0 %v514
    %633 = vmatprep.subr.mxu0 0.0
    %634 = vmatpush1.msra.mxu0 %v515
    %635 = vmatprep.subr.mxu0 0.0
    %636 = vmatpush1.msra.mxu0 %v516
    %637 = vmatprep.subr.mxu0 0.0
    %638 = vmatpush1.msra.mxu0 %v517
    %639 = vmatprep.subr.mxu0 0.0
    %640 = vmatpush1.msra.mxu0 %v518
    %641 = vmatprep.subr.mxu0 0.0
    %642 = vmatpush1.msra.mxu0 %v519
    %643 = vmatprep.subr.mxu0 0.0
    %644 = vmatpush1.msra.mxu0 %v520
    %645 = vmatprep.subr.mxu0 0.0
    %646 = vmatpush1.msra.mxu0 %v521
    %647 = vmatprep.subr.mxu0 0.0
    %648 = vmatpush1.msra.mxu0 %v522
    %649 = vmatprep.subr.mxu0 0.0
    %650 = vmatpush1.msra.mxu0 %v523
    %651 = vmatprep.subr.mxu0 0.0
    %652 = vmatpush1.msra.mxu0 0.0
    %653 = vmatprep.subr.mxu0 0.0
    %654 = vmatpush1.msra.mxu0 0.0
    %655 = vmatprep.subr.mxu0 0.0
    %656 = vmatpush1.msra.mxu0 0.0
    %657 = vmatprep.subr.mxu0 0.0
    %658 = vmatpush1.msra.mxu0 0.0
    %659 = vmatprep.subr.mxu0 0.0
    %660 = vmatpush1.msra.mxu0 0.0
    %661 = vmatprep.subr.mxu0 0.0
    %662 = vmatpush1.msra.mxu0 0.0
    %663 = vmatprep.subr.mxu0 0.0
    %664 = vmatpush1.msra.mxu0 0.0
    %665 = vmatprep.subr.mxu0 0.0
    %666 = vmatpush1.msra.mxu0 0.0
    %667 = vmatprep.subr.mxu0 0.0
    %668 = vmatpush1.msra.mxu0 0.0
    %669 = vmatprep.subr.mxu0 0.0
    %670 = vmatpush1.msra.mxu0 0.0
    %671 = vmatprep.subr.mxu0 0.0
    %672 = vmatpush1.msra.mxu0 0.0
    %673 = vmatprep.subr.mxu0 0.0
    %674 = vmatpush1.msra.mxu0 0.0
    %675 = vmatprep.subr.mxu0 0.0
    %676 = vmatpush1.msra.mxu0 0.0
    %677 = vmatprep.subr.mxu0 0.0
    %678 = vmatpush1.msra.mxu0 0.0
    %679 = vmatprep.subr.mxu0 0.0
    %680 = vmatpush1.msra.mxu0 0.0
    %681 = vmatprep.subr.mxu0 0.0
    %682 = vmatpush1.msra.mxu0 0.0
    %683 = vmatprep.mubr.f32.mxu0 0.0
    %684 = vmatmul.mubr.f32.gmra.mrb[0].mxu0 %v617
    %v685 = vpop.f32.mrb[0].mxu0
    %v686 = vadd.f32 %v613, %v685
    %v687 = vpop.f32.mrb[0].mxu0
    %688 = vdwg.mxu0
    %v689 = vld [vmem:[%s3 + $0x100] sm:$0xff]
    %v690 = vld [vmem:[%s3 + $0x108] sm:$0xff]
    %v691 = vld [vmem:[%s3 + $0x110] sm:$0xff]
    %v692 = vld [vmem:[%s3 + $0x118] sm:$0xff]
    %v693 = vld [vmem:[%s3 + $0x120] sm:$0xff]
    %v694 = vld [vmem:[%s3 + $0x128] sm:$0xff]
    %v695 = vld [vmem:[%s3 + $0x130] sm:$0xff]
    %v696 = vld [vmem:[%s3 + $0x138] sm:$0xff]
    %v697 = vld [vmem:[%s3 + $0x140] sm:$0xff]
    %v698 = vld [vmem:[%s3 + $0x148] sm:$0xff]
    %v699 = vld [vmem:[%s3 + $0x150] sm:$0xff]
    %v700 = vld [vmem:[%s3 + $0x158] sm:$0xff]
    %v701 = vld [vmem:[%s3 + $0x160] sm:$0xff]
    %v702 = vld [vmem:[%s3 + $0x168] sm:$0xff]
    %v703 = vld [vmem:[%s3 + $0x170] sm:$0xff]
    %v704 = vld [vmem:[%s3 + $0x178] sm:$0xff]
    %v705 = vrot.slane %v432, 2
    %v706 = vrot.slane %v505, 1
    %v707 = vsel %vm543, %v706, %v705
    %709 = vmatprep.subr.mxu0 0.0
    %710 = vmatpush1.msra.mxu0 %v689
    %711 = vmatprep.subr.mxu0 0.0
    %712 = vmatpush1.msra.mxu0 %v690
    %713 = vmatprep.subr.mxu0 0.0
    %714 = vmatpush1.msra.mxu0 %v691
    %715 = vmatprep.subr.mxu0 0.0
    %716 = vmatpush1.msra.mxu0 %v692
    %717 = vmatprep.subr.mxu0 0.0
    %718 = vmatpush1.msra.mxu0 %v693
    %719 = vmatprep.subr.mxu0 0.0
    %720 = vmatpush1.msra.mxu0 %v694
    %721 = vmatprep.subr.mxu0 0.0
    %722 = vmatpush1.msra.mxu0 %v695
    %723 = vmatprep.subr.mxu0 0.0
    %724 = vmatpush1.msra.mxu0 %v696
    %725 = vmatprep.subr.mxu0 0.0
    %726 = vmatpush1.msra.mxu0 %v697
    %727 = vmatprep.subr.mxu0 0.0
    %728 = vmatpush1.msra.mxu0 %v698
    %729 = vmatprep.subr.mxu0 0.0
    %730 = vmatpush1.msra.mxu0 %v699
    %731 = vmatprep.subr.mxu0 0.0
    %732 = vmatpush1.msra.mxu0 %v700
    %733 = vmatprep.subr.mxu0 0.0
    %734 = vmatpush1.msra.mxu0 %v701
    %735 = vmatprep.subr.mxu0 0.0
    %736 = vmatpush1.msra.mxu0 %v702
    %737 = vmatprep.subr.mxu0 0.0
    %738 = vmatpush1.msra.mxu0 %v703
    %739 = vmatprep.subr.mxu0 0.0
    %740 = vmatpush1.msra.mxu0 %v704
    %741 = vmatprep.subr.mxu0 0.0
    %742 = vmatpush1.msra.mxu0 0.0
    %743 = vmatprep.subr.mxu0 0.0
    %744 = vmatpush1.msra.mxu0 0.0
    %745 = vmatprep.subr.mxu0 0.0
    %746 = vmatpush1.msra.mxu0 0.0
    %747 = vmatprep.subr.mxu0 0.0
    %748 = vmatpush1.msra.mxu0 0.0
    %749 = vmatprep.subr.mxu0 0.0
    %750 = vmatpush1.msra.mxu0 0.0
    %751 = vmatprep.subr.mxu0 0.0
    %752 = vmatpush1.msra.mxu0 0.0
    %753 = vmatprep.subr.mxu0 0.0
    %754 = vmatpush1.msra.mxu0 0.0
    %755 = vmatprep.subr.mxu0 0.0
    %756 = vmatpush1.msra.mxu0 0.0
    %757 = vmatprep.subr.mxu0 0.0
    %758 = vmatpush1.msra.mxu0 0.0
    %759 = vmatprep.subr.mxu0 0.0
    %760 = vmatpush1.msra.mxu0 0.0
    %761 = vmatprep.subr.mxu0 0.0
    %762 = vmatpush1.msra.mxu0 0.0
    %763 = vmatprep.subr.mxu0 0.0
    %764 = vmatpush1.msra.mxu0 0.0
    %765 = vmatprep.subr.mxu0 0.0
    %766 = vmatpush1.msra.mxu0 0.0
    %767 = vmatprep.subr.mxu0 0.0
    %768 = vmatpush1.msra.mxu0 0.0
    %769 = vmatprep.subr.mxu0 0.0
    %770 = vmatpush1.msra.mxu0 0.0
    %771 = vmatprep.subr.mxu0 0.0
    %772 = vmatpush1.msra.mxu0 0.0
    %773 = vmatprep.mubr.f32.mxu0 0.0
    %774 = vmatmul.mubr.f32.gmra.mrb[0].mxu0 %v707
    %v775 = vpop.f32.mrb[0].mxu0
    %v776 = vadd.f32 0.0, %v775
    %v777 = vpop.f32.mrb[0].mxu0
    %778 = vdwg.mxu0
    %v779 = vadd.f32 %v686, %v776
    %v780 = vld [vmem:[%s3 + $0x180] sm:$0xff]
    %v781 = vld [vmem:[%s3 + $0x188] sm:$0xff]
    %v782 = vld [vmem:[%s3 + $0x190] sm:$0xff]
    %v783 = vld [vmem:[%s3 + $0x198] sm:$0xff]
    %v784 = vld [vmem:[%s3 + $0x1a0] sm:$0xff]
    %v785 = vld [vmem:[%s3 + $0x1a8] sm:$0xff]
    %v786 = vld [vmem:[%s3 + $0x1b0] sm:$0xff]
    %v787 = vld [vmem:[%s3 + $0x1b8] sm:$0xff]
    %v788 = vld [vmem:[%s3 + $0x1c0] sm:$0xff]
    %v789 = vld [vmem:[%s3 + $0x1c8] sm:$0xff]
    %v790 = vld [vmem:[%s3 + $0x1d0] sm:$0xff]
    %v791 = vld [vmem:[%s3 + $0x1d8] sm:$0xff]
    %v792 = vld [vmem:[%s3 + $0x1e0] sm:$0xff]
    %v793 = vld [vmem:[%s3 + $0x1e8] sm:$0xff]
    %v794 = vld [vmem:[%s3 + $0x1f0] sm:$0xff]
    %v795 = vld [vmem:[%s3 + $0x1f8] sm:$0xff]
    %v796 = vrot.slane %v432, 3
    %v797 = vrot.slane %v505, 2
    %v798 = vsel %vm543, %v797, %v796
    %800 = vmatprep.subr.mxu0 0.0
    %801 = vmatpush1.msra.mxu0 %v780
    %802 = vmatprep.subr.mxu0 0.0
    %803 = vmatpush1.msra.mxu0 %v781
    %804 = vmatprep.subr.mxu0 0.0
    %805 = vmatpush1.msra.mxu0 %v782
    %806 = vmatprep.subr.mxu0 0.0
    %807 = vmatpush1.msra.mxu0 %v783
    %808 = vmatprep.subr.mxu0 0.0
    %809 = vmatpush1.msra.mxu0 %v784
    %810 = vmatprep.subr.mxu0 0.0
    %811 = vmatpush1.msra.mxu0 %v785
    %812 = vmatprep.subr.mxu0 0.0
    %813 = vmatpush1.msra.mxu0 %v786
    %814 = vmatprep.subr.mxu0 0.0
    %815 = vmatpush1.msra.mxu0 %v787
    %816 = vmatprep.subr.mxu0 0.0
    %817 = vmatpush1.msra.mxu0 %v788
    %818 = vmatprep.subr.mxu0 0.0
    %819 = vmatpush1.msra.mxu0 %v789
    %820 = vmatprep.subr.mxu0 0.0
    %821 = vmatpush1.msra.mxu0 %v790
    %822 = vmatprep.subr.mxu0 0.0
    %823 = vmatpush1.msra.mxu0 %v791
    %824 = vmatprep.subr.mxu0 0.0
    %825 = vmatpush1.msra.mxu0 %v792
    %826 = vmatprep.subr.mxu0 0.0
    %827 = vmatpush1.msra.mxu0 %v793
    %828 = vmatprep.subr.mxu0 0.0
    %829 = vmatpush1.msra.mxu0 %v794
    %830 = vmatprep.subr.mxu0 0.0
    %831 = vmatpush1.msra.mxu0 %v795
    %832 = vmatprep.subr.mxu0 0.0
    %833 = vmatpush1.msra.mxu0 0.0
    %834 = vmatprep.subr.mxu0 0.0
    %835 = vmatpush1.msra.mxu0 0.0
    %836 = vmatprep.subr.mxu0 0.0
    %837 = vmatpush1.msra.mxu0 0.0
    %838 = vmatprep.subr.mxu0 0.0
    %839 = vmatpush1.msra.mxu0 0.0
    %840 = vmatprep.subr.mxu0 0.0
    %841 = vmatpush1.msra.mxu0 0.0
    %842 = vmatprep.subr.mxu0 0.0
    %843 = vmatpush1.msra.mxu0 0.0
    %844 = vmatprep.subr.mxu0 0.0
    %845 = vmatpush1.msra.mxu0 0.0
    %846 = vmatprep.subr.mxu0 0.0
    %847 = vmatpush1.msra.mxu0 0.0
    %848 = vmatprep.subr.mxu0 0.0
    %849 = vmatpush1.msra.mxu0 0.0
    %850 = vmatprep.subr.mxu0 0.0
    %851 = vmatpush1.msra.mxu0 0.0
    %852 = vmatprep.subr.mxu0 0.0
    %853 = vmatpush1.msra.mxu0 0.0
    %854 = vmatprep.subr.mxu0 0.0
    %855 = vmatpush1.msra.mxu0 0.0
    %856 = vmatprep.subr.mxu0 0.0
    %857 = vmatpush1.msra.mxu0 0.0
    %858 = vmatprep.subr.mxu0 0.0
    %859 = vmatpush1.msra.mxu0 0.0
    %860 = vmatprep.subr.mxu0 0.0
    %861 = vmatpush1.msra.mxu0 0.0
    %862 = vmatprep.subr.mxu0 0.0
    %863 = vmatpush1.msra.mxu0 0.0
    %864 = vmatprep.mubr.f32.mxu0 0.0
    %865 = vmatmul.mubr.f32.gmra.mrb[0].mxu0 %v798
    %v866 = vpop.f32.mrb[0].mxu0
    %v867 = vadd.f32 0.0, %v866
    %v868 = vpop.f32.mrb[0].mxu0
    %869 = vdwg.mxu0
    %v870 = vadd.f32 %v779, %v867
    %v871 = vld [vmem:[%s3 + $0x200] sm:$0xff]
    %v872 = vld [vmem:[%s3 + $0x208] sm:$0xff]
    %v873 = vld [vmem:[%s3 + $0x210] sm:$0xff]
    %v874 = vld [vmem:[%s3 + $0x218] sm:$0xff]
    %v875 = vld [vmem:[%s3 + $0x220] sm:$0xff]
    %v876 = vld [vmem:[%s3 + $0x228] sm:$0xff]
    %v877 = vld [vmem:[%s3 + $0x230] sm:$0xff]
    %v878 = vld [vmem:[%s3 + $0x238] sm:$0xff]
    %v879 = vld [vmem:[%s3 + $0x240] sm:$0xff]
    %v880 = vld [vmem:[%s3 + $0x248] sm:$0xff]
    %v881 = vld [vmem:[%s3 + $0x250] sm:$0xff]
    %v882 = vld [vmem:[%s3 + $0x258] sm:$0xff]
    %v883 = vld [vmem:[%s3 + $0x260] sm:$0xff]
    %v884 = vld [vmem:[%s3 + $0x268] sm:$0xff]
    %v885 = vld [vmem:[%s3 + $0x270] sm:$0xff]
    %v886 = vld [vmem:[%s3 + $0x278] sm:$0xff]
    %v887 = vrot.slane %v432, 4
    %v888 = vrot.slane %v505, 3
    %v889 = vsel %vm543, %v888, %v887
    %891 = vmatprep.subr.mxu0 0.0
    %892 = vmatpush1.msra.mxu0 %v871
    %893 = vmatprep.subr.mxu0 0.0
    %894 = vmatpush1.msra.mxu0 %v872
    %895 = vmatprep.subr.mxu0 0.0
    %896 = vmatpush1.msra.mxu0 %v873
    %897 = vmatprep.subr.mxu0 0.0
    %898 = vmatpush1.msra.mxu0 %v874
    %899 = vmatprep.subr.mxu0 0.0
    %900 = vmatpush1.msra.mxu0 %v875
    %901 = vmatprep.subr.mxu0 0.0
    %902 = vmatpush1.msra.mxu0 %v876
    %903 = vmatprep.subr.mxu0 0.0
    %904 = vmatpush1.msra.mxu0 %v877
    %905 = vmatprep.subr.mxu0 0.0
    %906 = vmatpush1.msra.mxu0 %v878
    %907 = vmatprep.subr.mxu0 0.0
    %908 = vmatpush1.msra.mxu0 %v879
    %909 = vmatprep.subr.mxu0 0.0
    %910 = vmatpush1.msra.mxu0 %v880
    %911 = vmatprep.subr.mxu0 0.0
    %912 = vmatpush1.msra.mxu0 %v881
    %913 = vmatprep.subr.mxu0 0.0
    %914 = vmatpush1.msra.mxu0 %v882
    %915 = vmatprep.subr.mxu0 0.0
    %916 = vmatpush1.msra.mxu0 %v883
    %917 = vmatprep.subr.mxu0 0.0
    %918 = vmatpush1.msra.mxu0 %v884
    %919 = vmatprep.subr.mxu0 0.0
    %920 = vmatpush1.msra.mxu0 %v885
    %921 = vmatprep.subr.mxu0 0.0
    %922 = vmatpush1.msra.mxu0 %v886
    %923 = vmatprep.subr.mxu0 0.0
    %924 = vmatpush1.msra.mxu0 0.0
    %925 = vmatprep.subr.mxu0 0.0
    %926 = vmatpush1.msra.mxu0 0.0
    %927 = vmatprep.subr.mxu0 0.0
    %928 = vmatpush1.msra.mxu0 0.0
    %929 = vmatprep.subr.mxu0 0.0
    %930 = vmatpush1.msra.mxu0 0.0
    %931 = vmatprep.subr.mxu0 0.0
    %932 = vmatpush1.msra.mxu0 0.0
    %933 = vmatprep.subr.mxu0 0.0
    %934 = vmatpush1.msra.mxu0 0.0
    %935 = vmatprep.subr.mxu0 0.0
    %936 = vmatpush1.msra.mxu0 0.0
    %937 = vmatprep.subr.mxu0 0.0
    %938 = vmatpush1.msra.mxu0 0.0
    %939 = vmatprep.subr.mxu0 0.0
    %940 = vmatpush1.msra.mxu0 0.0
    %941 = vmatprep.subr.mxu0 0.0
    %942 = vmatpush1.msra.mxu0 0.0
    %943 = vmatprep.subr.mxu0 0.0
    %944 = vmatpush1.msra.mxu0 0.0
    %945 = vmatprep.subr.mxu0 0.0
    %946 = vmatpush1.msra.mxu0 0.0
    %947 = vmatprep.subr.mxu0 0.0
    %948 = vmatpush1.msra.mxu0 0.0
    %949 = vmatprep.subr.mxu0 0.0
    %950 = vmatpush1.msra.mxu0 0.0
    %951 = vmatprep.subr.mxu0 0.0
    %952 = vmatpush1.msra.mxu0 0.0
    %953 = vmatprep.subr.mxu0 0.0
    %954 = vmatpush1.msra.mxu0 0.0
    %955 = vmatprep.mubr.f32.mxu0 0.0
    %956 = vmatmul.mubr.f32.gmra.mrb[0].mxu0 %v889
    %v957 = vpop.f32.mrb[0].mxu0
    %v958 = vadd.f32 0.0, %v957
    %v959 = vpop.f32.mrb[0].mxu0
    %960 = vdwg.mxu0
    %v961 = vadd.f32 %v870, %v958
    %v962 = vld [vmem:[%s3 + $0x280] sm:$0xff]
    %v963 = vld [vmem:[%s3 + $0x288] sm:$0xff]
    %v964 = vld [vmem:[%s3 + $0x290] sm:$0xff]
    %v965 = vld [vmem:[%s3 + $0x298] sm:$0xff]
    %v966 = vld [vmem:[%s3 + $0x2a0] sm:$0xff]
    %v967 = vld [vmem:[%s3 + $0x2a8] sm:$0xff]
    %v968 = vld [vmem:[%s3 + $0x2b0] sm:$0xff]
    %v969 = vld [vmem:[%s3 + $0x2b8] sm:$0xff]
    %v970 = vld [vmem:[%s3 + $0x2c0] sm:$0xff]
    %v971 = vld [vmem:[%s3 + $0x2c8] sm:$0xff]
    %v972 = vld [vmem:[%s3 + $0x2d0] sm:$0xff]
    %v973 = vld [vmem:[%s3 + $0x2d8] sm:$0xff]
    %v974 = vld [vmem:[%s3 + $0x2e0] sm:$0xff]
    %v975 = vld [vmem:[%s3 + $0x2e8] sm:$0xff]
    %v976 = vld [vmem:[%s3 + $0x2f0] sm:$0xff]
    %v977 = vld [vmem:[%s3 + $0x2f8] sm:$0xff]
    %v978 = vrot.slane %v432, 5
    %v979 = vrot.slane %v505, 4
    %v980 = vsel %vm543, %v979, %v978
    %982 = vmatprep.subr.mxu0 0.0
    %983 = vmatpush1.msra.mxu0 %v962
    %984 = vmatprep.subr.mxu0 0.0
    %985 = vmatpush1.msra.mxu0 %v963
    %986 = vmatprep.subr.mxu0 0.0
    %987 = vmatpush1.msra.mxu0 %v964
    %988 = vmatprep.subr.mxu0 0.0
    %989 = vmatpush1.msra.mxu0 %v965
    %990 = vmatprep.subr.mxu0 0.0
    %991 = vmatpush1.msra.mxu0 %v966
    %992 = vmatprep.subr.mxu0 0.0
    %993 = vmatpush1.msra.mxu0 %v967
    %994 = vmatprep.subr.mxu0 0.0
    %995 = vmatpush1.msra.mxu0 %v968
    %996 = vmatprep.subr.mxu0 0.0
    %997 = vmatpush1.msra.mxu0 %v969
    %998 = vmatprep.subr.mxu0 0.0
    %999 = vmatpush1.msra.mxu0 %v970
    %1000 = vmatprep.subr.mxu0 0.0
    %1001 = vmatpush1.msra.mxu0 %v971
    %1002 = vmatprep.subr.mxu0 0.0
    %1003 = vmatpush1.msra.mxu0 %v972
    %1004 = vmatprep.subr.mxu0 0.0
    %1005 = vmatpush1.msra.mxu0 %v973
    %1006 = vmatprep.subr.mxu0 0.0
    %1007 = vmatpush1.msra.mxu0 %v974
    %1008 = vmatprep.subr.mxu0 0.0
    %1009 = vmatpush1.msra.mxu0 %v975
    %1010 = vmatprep.subr.mxu0 0.0
    %1011 = vmatpush1.msra.mxu0 %v976
    %1012 = vmatprep.subr.mxu0 0.0
    %1013 = vmatpush1.msra.mxu0 %v977
    %1014 = vmatprep.subr.mxu0 0.0
    %1015 = vmatpush1.msra.mxu0 0.0
    %1016 = vmatprep.subr.mxu0 0.0
    %1017 = vmatpush1.msra.mxu0 0.0
    %1018 = vmatprep.subr.mxu0 0.0
    %1019 = vmatpush1.msra.mxu0 0.0
    %1020 = vmatprep.subr.mxu0 0.0
    %1021 = vmatpush1.msra.mxu0 0.0
    %1022 = vmatprep.subr.mxu0 0.0
    %1023 = vmatpush1.msra.mxu0 0.0
    %1024 = vmatprep.subr.mxu0 0.0
    %1025 = vmatpush1.msra.mxu0 0.0
    %1026 = vmatprep.subr.mxu0 0.0
    %1027 = vmatpush1.msra.mxu0 0.0
    %1028 = vmatprep.subr.mxu0 0.0
    %1029 = vmatpush1.msra.mxu0 0.0
    %1030 = vmatprep.subr.mxu0 0.0
    %1031 = vmatpush1.msra.mxu0 0.0
    %1032 = vmatprep.subr.mxu0 0.0
    %1033 = vmatpush1.msra.mxu0 0.0
    %1034 = vmatprep.subr.mxu0 0.0
    %1035 = vmatpush1.msra.mxu0 0.0
    %1036 = vmatprep.subr.mxu0 0.0
    %1037 = vmatpush1.msra.mxu0 0.0
    %1038 = vmatprep.subr.mxu0 0.0
    %1039 = vmatpush1.msra.mxu0 0.0
    %1040 = vmatprep.subr.mxu0 0.0
    %1041 = vmatpush1.msra.mxu0 0.0
    %1042 = vmatprep.subr.mxu0 0.0
    %1043 = vmatpush1.msra.mxu0 0.0
    %1044 = vmatprep.subr.mxu0 0.0
    %1045 = vmatpush1.msra.mxu0 0.0
    %1046 = vmatprep.mubr.f32.mxu0 0.0
    %1047 = vmatmul.mubr.f32.gmra.mrb[0].mxu0 %v980
    %v1048 = vpop.f32.mrb[0].mxu0
    %v1049 = vadd.f32 0.0, %v1048
    %v1050 = vpop.f32.mrb[0].mxu0
    %1051 = vdwg.mxu0
    %v1052 = vadd.f32 %v961, %v1049
    %v1053 = vld [vmem:[%s3 + $0x300] sm:$0xff]
    %v1054 = vld [vmem:[%s3 + $0x308] sm:$0xff]
    %v1055 = vld [vmem:[%s3 + $0x310] sm:$0xff]
    %v1056 = vld [vmem:[%s3 + $0x318] sm:$0xff]
    %v1057 = vld [vmem:[%s3 + $0x320] sm:$0xff]
    %v1058 = vld [vmem:[%s3 + $0x328] sm:$0xff]
    %v1059 = vld [vmem:[%s3 + $0x330] sm:$0xff]
    %v1060 = vld [vmem:[%s3 + $0x338] sm:$0xff]
    %v1061 = vld [vmem:[%s3 + $0x340] sm:$0xff]
    %v1062 = vld [vmem:[%s3 + $0x348] sm:$0xff]
    %v1063 = vld [vmem:[%s3 + $0x350] sm:$0xff]
    %v1064 = vld [vmem:[%s3 + $0x358] sm:$0xff]
    %v1065 = vld [vmem:[%s3 + $0x360] sm:$0xff]
    %v1066 = vld [vmem:[%s3 + $0x368] sm:$0xff]
    %v1067 = vld [vmem:[%s3 + $0x370] sm:$0xff]
    %v1068 = vld [vmem:[%s3 + $0x378] sm:$0xff]
    %v1069 = vrot.slane %v432, 6
    %v1070 = vrot.slane %v505, 5
    %v1071 = vsel %vm543, %v1070, %v1069
    %1073 = vmatprep.subr.mxu0 0.0
    %1074 = vmatpush1.msra.mxu0 %v1053
    %1075 = vmatprep.subr.mxu0 0.0
    %1076 = vmatpush1.msra.mxu0 %v1054
    %1077 = vmatprep.subr.mxu0 0.0
    %1078 = vmatpush1.msra.mxu0 %v1055
    %1079 = vmatprep.subr.mxu0 0.0
    %1080 = vmatpush1.msra.mxu0 %v1056
    %1081 = vmatprep.subr.mxu0 0.0
    %1082 = vmatpush1.msra.mxu0 %v1057
    %1083 = vmatprep.subr.mxu0 0.0
    %1084 = vmatpush1.msra.mxu0 %v1058
    %1085 = vmatprep.subr.mxu0 0.0
    %1086 = vmatpush1.msra.mxu0 %v1059
    %1087 = vmatprep.subr.mxu0 0.0
    %1088 = vmatpush1.msra.mxu0 %v1060
    %1089 = vmatprep.subr.mxu0 0.0
    %1090 = vmatpush1.msra.mxu0 %v1061
    %1091 = vmatprep.subr.mxu0 0.0
    %1092 = vmatpush1.msra.mxu0 %v1062
    %1093 = vmatprep.subr.mxu0 0.0
    %1094 = vmatpush1.msra.mxu0 %v1063
    %1095 = vmatprep.subr.mxu0 0.0
    %1096 = vmatpush1.msra.mxu0 %v1064
    %1097 = vmatprep.subr.mxu0 0.0
    %1098 = vmatpush1.msra.mxu0 %v1065
    %1099 = vmatprep.subr.mxu0 0.0
    %1100 = vmatpush1.msra.mxu0 %v1066
    %1101 = vmatprep.subr.mxu0 0.0
    %1102 = vmatpush1.msra.mxu0 %v1067
    %1103 = vmatprep.subr.mxu0 0.0
    %1104 = vmatpush1.msra.mxu0 %v1068
    %1105 = vmatprep.subr.mxu0 0.0
    %1106 = vmatpush1.msra.mxu0 0.0
    %1107 = vmatprep.subr.mxu0 0.0
    %1108 = vmatpush1.msra.mxu0 0.0
    %1109 = vmatprep.subr.mxu0 0.0
    %1110 = vmatpush1.msra.mxu0 0.0
    %1111 = vmatprep.subr.mxu0 0.0
    %1112 = vmatpush1.msra.mxu0 0.0
    %1113 = vmatprep.subr.mxu0 0.0
    %1114 = vmatpush1.msra.mxu0 0.0
    %1115 = vmatprep.subr.mxu0 0.0
    %1116 = vmatpush1.msra.mxu0 0.0
    %1117 = vmatprep.subr.mxu0 0.0
    %1118 = vmatpush1.msra.mxu0 0.0
    %1119 = vmatprep.subr.mxu0 0.0
    %1120 = vmatpush1.msra.mxu0 0.0
    %1121 = vmatprep.subr.mxu0 0.0
    %1122 = vmatpush1.msra.mxu0 0.0
    %1123 = vmatprep.subr.mxu0 0.0
    %1124 = vmatpush1.msra.mxu0 0.0
    %1125 = vmatprep.subr.mxu0 0.0
    %1126 = vmatpush1.msra.mxu0 0.0
    %1127 = vmatprep.subr.mxu0 0.0
    %1128 = vmatpush1.msra.mxu0 0.0
    %1129 = vmatprep.subr.mxu0 0.0
    %1130 = vmatpush1.msra.mxu0 0.0
    %1131 = vmatprep.subr.mxu0 0.0
    %1132 = vmatpush1.msra.mxu0 0.0
    %1133 = vmatprep.subr.mxu0 0.0
    %1134 = vmatpush1.msra.mxu0 0.0
    %1135 = vmatprep.subr.mxu0 0.0
    %1136 = vmatpush1.msra.mxu0 0.0
    %1137 = vmatprep.mubr.f32.mxu0 0.0
    %1138 = vmatmul.mubr.f32.gmra.mrb[0].mxu0 %v1071
    %v1139 = vpop.f32.mrb[0].mxu0
    %v1140 = vadd.f32 0.0, %v1139
    %v1141 = vpop.f32.mrb[0].mxu0
    %1142 = vdwg.mxu0
    %v1143 = vadd.f32 %v1052, %v1140
    %v1144 = vld [vmem:[%s3 + $0x380] sm:$0xff]
    %v1145 = vld [vmem:[%s3 + $0x388] sm:$0xff]
    %v1146 = vld [vmem:[%s3 + $0x390] sm:$0xff]
    %v1147 = vld [vmem:[%s3 + $0x398] sm:$0xff]
    %v1148 = vld [vmem:[%s3 + $0x3a0] sm:$0xff]
    %v1149 = vld [vmem:[%s3 + $0x3a8] sm:$0xff]
    %v1150 = vld [vmem:[%s3 + $0x3b0] sm:$0xff]
    %v1151 = vld [vmem:[%s3 + $0x3b8] sm:$0xff]
    %v1152 = vld [vmem:[%s3 + $0x3c0] sm:$0xff]
    %v1153 = vld [vmem:[%s3 + $0x3c8] sm:$0xff]
    %v1154 = vld [vmem:[%s3 + $0x3d0] sm:$0xff]
    %v1155 = vld [vmem:[%s3 + $0x3d8] sm:$0xff]
    %v1156 = vld [vmem:[%s3 + $0x3e0] sm:$0xff]
    %v1157 = vld [vmem:[%s3 + $0x3e8] sm:$0xff]
    %v1158 = vld [vmem:[%s3 + $0x3f0] sm:$0xff]
    %v1159 = vld [vmem:[%s3 + $0x3f8] sm:$0xff]
    %v1160 = vrot.slane %v432, 7
    %v1161 = vrot.slane %v505, 6
    %v1162 = vsel %vm543, %v1161, %v1160
    %1164 = vmatprep.subr.mxu0 0.0
    %1165 = vmatpush1.msra.mxu0 %v1144
    %1166 = vmatprep.subr.mxu0 0.0
    %1167 = vmatpush1.msra.mxu0 %v1145
    %1168 = vmatprep.subr.mxu0 0.0
    %1169 = vmatpush1.msra.mxu0 %v1146
    %1170 = vmatprep.subr.mxu0 0.0
    %1171 = vmatpush1.msra.mxu0 %v1147
    %1172 = vmatprep.subr.mxu0 0.0
    %1173 = vmatpush1.msra.mxu0 %v1148
    %1174 = vmatprep.subr.mxu0 0.0
    %1175 = vmatpush1.msra.mxu0 %v1149
    %1176 = vmatprep.subr.mxu0 0.0
    %1177 = vmatpush1.msra.mxu0 %v1150
    %1178 = vmatprep.subr.mxu0 0.0
    %1179 = vmatpush1.msra.mxu0 %v1151
    %1180 = vmatprep.subr.mxu0 0.0
    %1181 = vmatpush1.msra.mxu0 %v1152
    %1182 = vmatprep.subr.mxu0 0.0
    %1183 = vmatpush1.msra.mxu0 %v1153
    %1184 = vmatprep.subr.mxu0 0.0
    %1185 = vmatpush1.msra.mxu0 %v1154
    %1186 = vmatprep.subr.mxu0 0.0
    %1187 = vmatpush1.msra.mxu0 %v1155
    %1188 = vmatprep.subr.mxu0 0.0
    %1189 = vmatpush1.msra.mxu0 %v1156
    %1190 = vmatprep.subr.mxu0 0.0
    %1191 = vmatpush1.msra.mxu0 %v1157
    %1192 = vmatprep.subr.mxu0 0.0
    %1193 = vmatpush1.msra.mxu0 %v1158
    %1194 = vmatprep.subr.mxu0 0.0
    %1195 = vmatpush1.msra.mxu0 %v1159
    %1196 = vmatprep.subr.mxu0 0.0
    %1197 = vmatpush1.msra.mxu0 0.0
    %1198 = vmatprep.subr.mxu0 0.0
    %1199 = vmatpush1.msra.mxu0 0.0
    %1200 = vmatprep.subr.mxu0 0.0
    %1201 = vmatpush1.msra.mxu0 0.0
    %1202 = vmatprep.subr.mxu0 0.0
    %1203 = vmatpush1.msra.mxu0 0.0
    %1204 = vmatprep.subr.mxu0 0.0
    %1205 = vmatpush1.msra.mxu0 0.0
    %1206 = vmatprep.subr.mxu0 0.0
    %1207 = vmatpush1.msra.mxu0 0.0
    %1208 = vmatprep.subr.mxu0 0.0
    %1209 = vmatpush1.msra.mxu0 0.0
    %1210 = vmatprep.subr.mxu0 0.0
    %1211 = vmatpush1.msra.mxu0 0.0
    %1212 = vmatprep.subr.mxu0 0.0
    %1213 = vmatpush1.msra.mxu0 0.0
    %1214 = vmatprep.subr.mxu0 0.0
    %1215 = vmatpush1.msra.mxu0 0.0
    %1216 = vmatprep.subr.mxu0 0.0
    %1217 = vmatpush1.msra.mxu0 0.0
    %1218 = vmatprep.subr.mxu0 0.0
    %1219 = vmatpush1.msra.mxu0 0.0
    %1220 = vmatprep.subr.mxu0 0.0
    %1221 = vmatpush1.msra.mxu0 0.0
    %1222 = vmatprep.subr.mxu0 0.0
    %1223 = vmatpush1.msra.mxu0 0.0
    %1224 = vmatprep.subr.mxu0 0.0
    %1225 = vmatpush1.msra.mxu0 0.0
    %1226 = vmatprep.subr.mxu0 0.0
    %1227 = vmatpush1.msra.mxu0 0.0
    %1228 = vmatprep.mubr.f32.mxu0 0.0
    %1229 = vmatmul.mubr.f32.gmra.mrb[0].mxu0 %v1162
    %v1230 = vpop.f32.mrb[0].mxu0
    %v1231 = vadd.f32 0.0, %v1230
    %v1232 = vpop.f32.mrb[0].mxu0
    %1233 = vdwg.mxu0
    %v1234 = vadd.f32 %v1143, %v1231
    %v1235 = vld [vmem:[%s4] sm:$0x1]
    %v1237 = vlaneseq
    %v1238 = vshrl.u32 %v1237, 7
    %v1239 = vsub.s32 0, %v1238
    %v1240 = vrot.slane %v1235, %v1239
    %v1242 = vadd.f32 %v1234, %v1240
    %vm1243 = vcmp.ge.f32.partialorder %v1242, 0.0
    %v1244 = vmul.f32 %v1242, 0.01
    %v1245 = vsel %vm1243, %v1242, %v1244
    %v1246 = vld [vmem:[%s5] sm:$0xff]
    %v1247 = vld [vmem:[%s5 + $0x8] sm:$0xff]
    %v1248 = vld [vmem:[%s5 + $0x10] sm:$0xff]
    %v1249 = vld [vmem:[%s5 + $0x18] sm:$0xff]
    %v1250 = vld [vmem:[%s6] sm:$0x1]
    %v1252 = vlaneseq
    %v1253 = vshrl.u32 %v1252, 7
    %v1254 = vsub.s32 0, %v1253
    %v1255 = vrot.slane %v1250, %v1254
    %vm1257 = vcmask 261120
    %v1259 = vsel %vm1257, %v1245, 0
    %1261 = vmatprep.subr.mxu0 0.0
    %1262 = vmatpush1.msra.mxu0 %v1246
    %1263 = vmatprep.subr.mxu0 0.0
    %1264 = vmatpush1.msra.mxu0 %v1247
    %1265 = vmatprep.subr.mxu0 0.0
    %1266 = vmatpush1.msra.mxu0 %v1248
    %1267 = vmatprep.subr.mxu0 0.0
    %1268 = vmatpush1.msra.mxu0 %v1249
    %1269 = vmatprep.subr.mxu0 0.0
    %1270 = vmatpush1.msra.mxu0 0.0
    %1271 = vmatprep.subr.mxu0 0.0
    %1272 = vmatpush1.msra.mxu0 0.0
    %1273 = vmatprep.subr.mxu0 0.0
    %1274 = vmatpush1.msra.mxu0 0.0
    %1275 = vmatprep.subr.mxu0 0.0
    %1276 = vmatpush1.msra.mxu0 0.0
    %1277 = vmatprep.subr.mxu0 0.0
    %1278 = vmatpush1.msra.mxu0 0.0
    %1279 = vmatprep.subr.mxu0 0.0
    %1280 = vmatpush1.msra.mxu0 0.0
    %1281 = vmatprep.subr.mxu0 0.0
    %1282 = vmatpush1.msra.mxu0 0.0
    %1283 = vmatprep.subr.mxu0 0.0
    %1284 = vmatpush1.msra.mxu0 0.0
    %1285 = vmatprep.subr.mxu0 0.0
    %1286 = vmatpush1.msra.mxu0 0.0
    %1287 = vmatprep.subr.mxu0 0.0
    %1288 = vmatpush1.msra.mxu0 0.0
    %1289 = vmatprep.subr.mxu0 0.0
    %1290 = vmatpush1.msra.mxu0 0.0
    %1291 = vmatprep.subr.mxu0 0.0
    %1292 = vmatpush1.msra.mxu0 0.0
    %1293 = vmatprep.subr.mxu0 0.0
    %1294 = vmatpush1.msra.mxu0 0.0
    %1295 = vmatprep.subr.mxu0 0.0
    %1296 = vmatpush1.msra.mxu0 0.0
    %1297 = vmatprep.subr.mxu0 0.0
    %1298 = vmatpush1.msra.mxu0 0.0
    %1299 = vmatprep.subr.mxu0 0.0
    %1300 = vmatpush1.msra.mxu0 0.0
    %1301 = vmatprep.subr.mxu0 0.0
    %1302 = vmatpush1.msra.mxu0 0.0
    %1303 = vmatprep.subr.mxu0 0.0
    %1304 = vmatpush1.msra.mxu0 0.0
    %1305 = vmatprep.subr.mxu0 0.0
    %1306 = vmatpush1.msra.mxu0 0.0
    %1307 = vmatprep.subr.mxu0 0.0
    %1308 = vmatpush1.msra.mxu0 0.0
    %1309 = vmatprep.subr.mxu0 0.0
    %1310 = vmatpush1.msra.mxu0 0.0
    %1311 = vmatprep.subr.mxu0 0.0
    %1312 = vmatpush1.msra.mxu0 0.0
    %1313 = vmatprep.subr.mxu0 0.0
    %1314 = vmatpush1.msra.mxu0 0.0
    %1315 = vmatprep.subr.mxu0 0.0
    %1316 = vmatpush1.msra.mxu0 0.0
    %1317 = vmatprep.subr.mxu0 0.0
    %1318 = vmatpush1.msra.mxu0 0.0
    %1319 = vmatprep.subr.mxu0 0.0
    %1320 = vmatpush1.msra.mxu0 0.0
    %1321 = vmatprep.subr.mxu0 0.0
    %1322 = vmatpush1.msra.mxu0 0.0
    %1323 = vmatprep.subr.mxu0 0.0
    %1324 = vmatpush1.msra.mxu0 0.0
    %1325 = vmatprep.mubr.f32.mxu0 0.0
    %1326 = vmatmul.mubr.f32.gmra.mrb[0].mxu0 %v1259
    %v1327 = vpop.f32.mrb[0].mxu0
    %v1328 = vadd.f32 %v1255, %v1327
    %v1329 = vpop.f32.mrb[0].mxu0
    %1330 = vdwg.mxu0
    %1331 = vst [vmem:[#allocation2] sm:$0x3] %v1328
    // Predicated region
    $region30: #{tpu_custom_call.1} parent=1 // pred_check
      _
    $region31: #{tpu_custom_call.1} parent=1 // pred_check_branch
      %1333 = sbr.rel (0) target = $region33
    $region32: #{tpu_custom_call.1} parent=1 // pred_region
      %s1335 = ssub.s32 32, 32
      %1336 = vsyncadd [#allocation3], %s1335
      %s1338 = sshll.u32 [#allocation2], 4
      %s1339 = int_to_ptr.vmem [resolvable:$true] %s1338
      %1341 = dma.vmem_to_hbm [thread:$0]  %s1339, 32, %s7, [#allocation3]
    $region33: #{tpu_custom_call.1} parent=1 // pred_fallthru
      _
    // Predicated region
    $region34: #{tpu_custom_call.1} parent=1 // pred_check
      _
    $region35: #{tpu_custom_call.1} parent=1 // pred_check_branch
      %1343 = sbr.rel (0) target = $region37
    $region36: #{tpu_custom_call.1} parent=1 // pred_region
      %1344 = dma.done [#allocation3], 32
    $region37: #{tpu_custom_call.1} parent=1 // pred_fallthru
      _
    %1345 = vsyncpa [#allocation3], 1

</llo_original>
